<compile_context>
chip_gen: v6e
topology: v6e:2x2x1
jax: 0.10.0
libtpu: 0.0.40
codegen_flags: <defaults>
</compile_context>

<pallas_src>
import functools

import jax
import jax.numpy as jnp
from jax.experimental import pallas as pl
from jax.experimental.pallas import tpu as pltpu


def fused_dilated_conv_kernel(x_ref, w_ref, b_ref, mask_ref, gamma_ref, beta_ref,
                              o_ref, col_ref, yall_ref,
                              *, N, C_in, K, dilation, Wp, H_out, W_out, eps):
    """Whole (tiny) problem in one grid step.

    x_ref    : (N, C_in, Lp)   f32   zero-padded images, spatial dims flattened
    w_ref    : (C_out, K*K*C_in) bf16 weights, contraction ordered (kh, kw, c_in)
    b_ref    : (C_out, 1)      f32   conv bias
    mask_ref : (1, H_out*Wp)   f32   1.0 on valid (non-wrapped) columns else 0.0
    gamma_ref/beta_ref : (C_out, 1) f32 BatchNorm affine parameters
    o_ref    : (N, C_out, H_out*W_out) f32 final output (lane-dense)
    col_ref  : (K*K*C_in, H_out*Wp)  f32 im2col VMEM scratch
    yall_ref : (N, C_out, H_out*Wp)  f32 post-ReLU activations (junk cols zeroed)
    """
    HWp = H_out * Wp
    C_out = w_ref.shape[0]
    count = float(N * H_out * W_out)

    ssum = jnp.zeros((C_out, 1), jnp.float32)
    ssq = jnp.zeros((C_out, 1), jnp.float32)

    # ---- conv + bias + ReLU + per-image stats (static loop over tiny batch) ----
    for n in range(N):
        # im2col: each tap is one contiguous slice of the flattened padded image
        # (wrap-around trick), written into a contiguous block of rows.
        for kh in range(K):
            for kw in range(K):
                t = kh * K + kw
                off = (kh * Wp + kw) * dilation
                col_ref[t * C_in:(t + 1) * C_in, :] = x_ref[n, :, off:off + HWp]

        # Single MXU matmul per image (bf16 x bf16 -> f32 accumulate).
        acc = jnp.dot(w_ref[...], col_ref[...].astype(jnp.bfloat16),
                      preferred_element_type=jnp.float32)            # (C_out, HWp)
        acc = jnp.maximum(acc + b_ref[...], 0.0) * mask_ref[...]     # junk cols -> 0
        yall_ref[n] = acc

        ssum = ssum + jnp.sum(acc, axis=1, keepdims=True)
        ssq = ssq + jnp.sum(acc * acc, axis=1, keepdims=True)

    # ---- BatchNorm coefficients (training mode: biased batch statistics) ----
    mean = ssum * (1.0 / count)
    var = jnp.maximum(ssq * (1.0 / count) - mean * mean, 0.0)
    inv_std = jax.lax.rsqrt(var + eps)
    scale = gamma_ref[...] * inv_std                                  # (C_out, 1)
    shift = beta_ref[...] - mean * scale

    # ---- affine + compaction of Wp-wide rows down to W_out (drop wrapped cols) ----
    for n in range(N):
        yall_ref[n] = yall_ref[n] * scale + shift
        for h in range(H_out):
            o_ref[n, :, h * W_out:(h + 1) * W_out] = \
                yall_ref[n, :, h * Wp:h * Wp + W_out]


def dilated_conv_forward(x_nchw, weight_oihw, bias, gamma, beta,
                         *, dilation=1, padding=1, eps=1e-5, dropout_rate=0.0):
    """Forward of dilated_conv in training mode (BatchNorm uses batch statistics)."""
    # TODO(synk): Dropout2d with p>0 not implemented (module default p=0.0 is identity).
    if dropout_rate > 0.0:
        raise NotImplementedError("Dropout2d with p > 0 is not implemented")

    N, C_in, H, W = x_nchw.shape
    C_out, _, K, _ = weight_oihw.shape
    Hp, Wp = H + 2 * padding, W + 2 * padding
    H_out = Hp - dilation * (K - 1)
    W_out = Wp - dilation * (K - 1)
    HW = H_out * W_out
    HWp = H_out * Wp
    KKC = K * K * C_in

    # ---- glue (plain JAX): pad + flatten spatial (free reshape), weight reorder ----
    extra_rows = -(-(dilation * (K - 1)) // Wp)   # room for the largest tap offset
    xp = jnp.pad(x_nchw.astype(jnp.float32),
                 ((0, 0), (0, 0), (padding, padding + extra_rows), (padding, padding)))
    Lp = (Hp + extra_rows) * Wp
    xp_flat = xp.reshape(N, C_in, Lp)

    w2d = jnp.transpose(weight_oihw, (0, 2, 3, 1)).reshape(C_out, KKC)
    w2d = w2d.astype(jnp.bfloat16)
    b2 = bias.reshape(C_out, 1).astype(jnp.float32)
    g2 = gamma.reshape(C_out, 1).astype(jnp.float32)
    bt2 = beta.reshape(C_out, 1).astype(jnp.float32)

    # Valid (non-wrapped) columns of the H_out x Wp working layout: s < W_out per row.
    lane = jnp.arange(HWp, dtype=jnp.int32)
    valid_mask = ((lane % Wp) < W_out).astype(jnp.float32).reshape(1, HWp)

    kern = functools.partial(fused_dilated_conv_kernel,
                             N=N, C_in=C_in, K=K, dilation=dilation,
                             Wp=Wp, H_out=H_out, W_out=W_out, eps=eps)

    out_flat = pl.pallas_call(
        kern,
        out_shape=jax.ShapeDtypeStruct((N, C_out, HW), jnp.float32),
        grid=(1,),
        in_specs=[
            pl.BlockSpec((N, C_in, Lp), lambda i: (0, 0, 0)),
            pl.BlockSpec((C_out, KKC), lambda i: (0, 0)),
            pl.BlockSpec((C_out, 1), lambda i: (0, 0)),
            pl.BlockSpec((1, HWp), lambda i: (0, 0)),
            pl.BlockSpec((C_out, 1), lambda i: (0, 0)),
            pl.BlockSpec((C_out, 1), lambda i: (0, 0)),
        ],
        out_specs=pl.BlockSpec((N, C_out, HW), lambda i: (0, 0, 0)),
        scratch_shapes=[
            pltpu.VMEM((KKC, HWp), jnp.float32),      # im2col scratch
            pltpu.VMEM((N, C_out, HWp), jnp.float32),  # post-ReLU activations
        ],
        compiler_params=pltpu.CompilerParams(
            dimension_semantics=("arbitrary",)),
    )(xp_flat, w2d, b2, valid_mask, g2, bt2)

    return out_flat.reshape(N, C_out, H_out, W_out)   # free contiguous reshape to NCHW


def reference_forward(x, w, b, gamma, beta, *, dilation=1, padding=1, eps=1e-5):
    # Same numerics as the kernel path: bf16 conv operands, f32 accumulation,
    # f32 bias / ReLU / training-mode BatchNorm.
    y = jax.lax.conv_general_dilated(
        x.astype(jnp.bfloat16), w.astype(jnp.bfloat16),
        window_strides=(1, 1),
        padding=[(padding, padding), (padding, padding)],
        rhs_dilation=(dilation, dilation),
        dimension_numbers=("NCHW", "OIHW", "NCHW"),
        preferred_element_type=jnp.float32)
    y = y + b[None, :, None, None]
    y = jnp.maximum(y, 0.0)
    mean = y.mean(axis=(0, 2, 3), keepdims=True)
    var = ((y - mean) ** 2).mean(axis=(0, 2, 3), keepdims=True)
    yn = (y - mean) / jnp.sqrt(var + eps)
    return yn * gamma[None, :, None, None] + beta[None, :, None, None]


if __name__ == "__main__":
    key = jax.random.PRNGKey(0)
    k_x, k_w, k_b = jax.random.split(key, 3)

    N, C_in, C_out, H, W, K = 2, 4, 8, 16, 16, 3

    x = jax.random.normal(k_x, (N, C_in, H, W), jnp.float32)
    # nn.Conv2d-like init (deterministic): small uniform weights / bias.
    fan_in = C_in * K * K
    bound = 1.0 / (fan_in ** 0.5)
    weight = jax.random.uniform(k_w, (C_out, C_in, K, K), jnp.float32,
                                minval=-bound, maxval=bound)
    bias = jax.random.uniform(k_b, (C_out,), jnp.float32,
                              minval=-bound, maxval=bound)
    # nn.BatchNorm2d default init.
    gamma = jnp.ones((C_out,), jnp.float32)
    beta = jnp.zeros((C_out,), jnp.float32)

    out = dilated_conv_forward(x, weight, bias, gamma, beta, dilation=1, padding=1)
    out = jax.block_until_ready(out)

    ref = reference_forward(x, weight, bias, gamma, beta, dilation=1, padding=1)
    max_err = float(jnp.max(jnp.abs(out - ref)))
    assert out.shape == (N, C_out, H, W), out.shape
    # Both paths use bf16 conv operands with f32 accumulation; the remaining
    # difference is only f32 summation order, so a tight tolerance still holds.
    assert max_err < 2e-3, f"max abs err {max_err}"
    print("KERNEL_OK")
</pallas_src>

<mosaic_0001>
module attributes {stable_mosaic.version = 11 : i64} {
  func.func @fused_dilated_conv_kernel(%arg0: i32, %arg1: memref<2x4x342xf32, #tpu.memory_space<vmem>>, %arg2: memref<8x36xbf16, #tpu.memory_space<vmem>>, %arg3: memref<8x1xf32, #tpu.memory_space<vmem>>, %arg4: memref<1x288xf32, #tpu.memory_space<vmem>>, %arg5: memref<8x1xf32, #tpu.memory_space<vmem>>, %arg6: memref<8x1xf32, #tpu.memory_space<vmem>>, %arg7: memref<2x8x256xf32, #tpu.memory_space<vmem>>, %arg8: memref<36x288xf32, #tpu.memory_space<vmem>>, %arg9: memref<2x8x288xf32, #tpu.memory_space<vmem>>) attributes {dimension_semantics = [#tpu.dimension_semantics<arbitrary>], iteration_bounds = array<i64: 1>, scalar_prefetch = 0 : i64, scratch_operands = 2 : i64, tpu.core_type = #tpu.core_type<tc>, window_params = [{pipeline_mode = #tpu.pipeline_mode<synchronous>, transform_indices = @transform_0, window_bounds = array<i64: 2, 4, 342>}, {pipeline_mode = #tpu.pipeline_mode<synchronous>, transform_indices = @transform_1, window_bounds = array<i64: 8, 36>}, {pipeline_mode = #tpu.pipeline_mode<synchronous>, transform_indices = @transform_2, window_bounds = array<i64: 8, 1>}, {pipeline_mode = #tpu.pipeline_mode<synchronous>, transform_indices = @transform_3, window_bounds = array<i64: 1, 288>}, {pipeline_mode = #tpu.pipeline_mode<synchronous>, transform_indices = @transform_4, window_bounds = array<i64: 8, 1>}, {pipeline_mode = #tpu.pipeline_mode<synchronous>, transform_indices = @transform_5, window_bounds = array<i64: 8, 1>}, {pipeline_mode = #tpu.pipeline_mode<synchronous>, transform_indices = @transform_6, window_bounds = array<i64: 2, 8, 256>}]} {
    %cst = arith.constant 0.000000e+00 : f32
    %0 = vector.broadcast %cst : f32 to vector<8x1xf32>
    %cst_0 = arith.constant 0.000000e+00 : f32
    %1 = vector.broadcast %cst_0 : f32 to vector<8x1xf32>
    %c0 = arith.constant 0 : index
    %c0_1 = arith.constant 0 : index
    %c0_2 = arith.constant 0 : index
    %2 = vector.load %arg1[%c0, %c0_1, %c0_2] : memref<2x4x342xf32, #tpu.memory_space<vmem>>, vector<1x4x288xf32>
    %3 = vector.shape_cast %2 : vector<1x4x288xf32> to vector<4x288xf32>
    %c0_3 = arith.constant 0 : index
    %c0_4 = arith.constant 0 : index
    %4 = vector.load %arg8[%c0_3, %c0_4] : memref<36x288xf32, #tpu.memory_space<vmem>>, vector<4x288xf32>
    tpu.vector_store %arg8[%c0_3, %c0_4], %3 {strides = array<i32>} : memref<36x288xf32, #tpu.memory_space<vmem>>, vector<4x288xf32>,
    %c0_5 = arith.constant 0 : index
    %c0_6 = arith.constant 0 : index
    %c1 = arith.constant 1 : index
    %5 = vector.load %arg1[%c0_5, %c0_6, %c1] : memref<2x4x342xf32, #tpu.memory_space<vmem>>, vector<1x4x288xf32>
    %6 = vector.shape_cast %5 : vector<1x4x288xf32> to vector<4x288xf32>
    %c4 = arith.constant 4 : index
    %c0_7 = arith.constant 0 : index
    %7 = vector.load %arg8[%c4, %c0_7] : memref<36x288xf32, #tpu.memory_space<vmem>>, vector<4x288xf32>
    tpu.vector_store %arg8[%c4, %c0_7], %6 {strides = array<i32>} : memref<36x288xf32, #tpu.memory_space<vmem>>, vector<4x288xf32>,
    %c0_8 = arith.constant 0 : index
    %c0_9 = arith.constant 0 : index
    %c2 = arith.constant 2 : index
    %8 = vector.load %arg1[%c0_8, %c0_9, %c2] : memref<2x4x342xf32, #tpu.memory_space<vmem>>, vector<1x4x288xf32>
    %9 = vector.shape_cast %8 : vector<1x4x288xf32> to vector<4x288xf32>
    %c8 = arith.constant 8 : index
    %c0_10 = arith.constant 0 : index
    %10 = vector.load %arg8[%c8, %c0_10] : memref<36x288xf32, #tpu.memory_space<vmem>>, vector<4x288xf32>
    tpu.vector_store %arg8[%c8, %c0_10], %9 {strides = array<i32>} : memref<36x288xf32, #tpu.memory_space<vmem>>, vector<4x288xf32>,
    %c0_11 = arith.constant 0 : index
    %c0_12 = arith.constant 0 : index
    %c18 = arith.constant 18 : index
    %11 = vector.load %arg1[%c0_11, %c0_12, %c18] : memref<2x4x342xf32, #tpu.memory_space<vmem>>, vector<1x4x288xf32>
    %12 = vector.shape_cast %11 : vector<1x4x288xf32> to vector<4x288xf32>
    %c12 = arith.constant 12 : index
    %c0_13 = arith.constant 0 : index
    %13 = vector.load %arg8[%c12, %c0_13] : memref<36x288xf32, #tpu.memory_space<vmem>>, vector<4x288xf32>
    tpu.vector_store %arg8[%c12, %c0_13], %12 {strides = array<i32>} : memref<36x288xf32, #tpu.memory_space<vmem>>, vector<4x288xf32>,
    %c0_14 = arith.constant 0 : index
    %c0_15 = arith.constant 0 : index
    %c19 = arith.constant 19 : index
    %14 = vector.load %arg1[%c0_14, %c0_15, %c19] : memref<2x4x342xf32, #tpu.memory_space<vmem>>, vector<1x4x288xf32>
    %15 = vector.shape_cast %14 : vector<1x4x288xf32> to vector<4x288xf32>
    %c16 = arith.constant 16 : index
    %c0_16 = arith.constant 0 : index
    %16 = vector.load %arg8[%c16, %c0_16] : memref<36x288xf32, #tpu.memory_space<vmem>>, vector<4x288xf32>
    tpu.vector_store %arg8[%c16, %c0_16], %15 {strides = array<i32>} : memref<36x288xf32, #tpu.memory_space<vmem>>, vector<4x288xf32>,
    %c0_17 = arith.constant 0 : index
    %c0_18 = arith.constant 0 : index
    %c20 = arith.constant 20 : index
    %17 = vector.load %arg1[%c0_17, %c0_18, %c20] : memref<2x4x342xf32, #tpu.memory_space<vmem>>, vector<1x4x288xf32>
    %18 = vector.shape_cast %17 : vector<1x4x288xf32> to vector<4x288xf32>
    %c20_19 = arith.constant 20 : index
    %c0_20 = arith.constant 0 : index
    %19 = vector.load %arg8[%c20_19, %c0_20] : memref<36x288xf32, #tpu.memory_space<vmem>>, vector<4x288xf32>
    tpu.vector_store %arg8[%c20_19, %c0_20], %18 {strides = array<i32>} : memref<36x288xf32, #tpu.memory_space<vmem>>, vector<4x288xf32>,
    %c0_21 = arith.constant 0 : index
    %c0_22 = arith.constant 0 : index
    %c36 = arith.constant 36 : index
    %20 = vector.load %arg1[%c0_21, %c0_22, %c36] : memref<2x4x342xf32, #tpu.memory_space<vmem>>, vector<1x4x288xf32>
    %21 = vector.shape_cast %20 : vector<1x4x288xf32> to vector<4x288xf32>
    %c24 = arith.constant 24 : index
    %c0_23 = arith.constant 0 : index
    %22 = vector.load %arg8[%c24, %c0_23] : memref<36x288xf32, #tpu.memory_space<vmem>>, vector<4x288xf32>
    tpu.vector_store %arg8[%c24, %c0_23], %21 {strides = array<i32>} : memref<36x288xf32, #tpu.memory_space<vmem>>, vector<4x288xf32>,
    %c0_24 = arith.constant 0 : index
    %c0_25 = arith.constant 0 : index
    %c37 = arith.constant 37 : index
    %23 = vector.load %arg1[%c0_24, %c0_25, %c37] : memref<2x4x342xf32, #tpu.memory_space<vmem>>, vector<1x4x288xf32>
    %24 = vector.shape_cast %23 : vector<1x4x288xf32> to vector<4x288xf32>
    %c28 = arith.constant 28 : index
    %c0_26 = arith.constant 0 : index
    %25 = vector.load %arg8[%c28, %c0_26] : memref<36x288xf32, #tpu.memory_space<vmem>>, vector<4x288xf32>
    tpu.vector_store %arg8[%c28, %c0_26], %24 {strides = array<i32>} : memref<36x288xf32, #tpu.memory_space<vmem>>, vector<4x288xf32>,
    %c0_27 = arith.constant 0 : index
    %c0_28 = arith.constant 0 : index
    %c38 = arith.constant 38 : index
    %26 = vector.load %arg1[%c0_27, %c0_28, %c38] : memref<2x4x342xf32, #tpu.memory_space<vmem>>, vector<1x4x288xf32>
    %27 = vector.shape_cast %26 : vector<1x4x288xf32> to vector<4x288xf32>
    %c32 = arith.constant 32 : index
    %c0_29 = arith.constant 0 : index
    %28 = vector.load %arg8[%c32, %c0_29] : memref<36x288xf32, #tpu.memory_space<vmem>>, vector<4x288xf32>
    tpu.vector_store %arg8[%c32, %c0_29], %27 {strides = array<i32>} : memref<36x288xf32, #tpu.memory_space<vmem>>, vector<4x288xf32>,
    %c0_30 = arith.constant 0 : index
    %c0_31 = arith.constant 0 : index
    %29 = vector.load %arg2[%c0_30, %c0_31] : memref<8x36xbf16, #tpu.memory_space<vmem>>, vector<8x36xbf16>
    %c0_32 = arith.constant 0 : index
    %c0_33 = arith.constant 0 : index
    %30 = vector.load %arg8[%c0_32, %c0_33] : memref<36x288xf32, #tpu.memory_space<vmem>>, vector<36x288xf32>
    %31 = arith.truncf %30 : vector<36x288xf32> to vector<36x288xbf16>
    %cst_34 = arith.constant dense<0.000000e+00> : vector<8x288xf32>
    %32 = tpu.matmul %29, %31, %cst_34 {dimension_numbers = #tpu.dot_dimension_numbers<[1], [0], [0], [1], [0, 0, 1, 1], [], []>} : vector<8x36xbf16>, vector<36x288xbf16>, vector<8x288xf32> -> vector<8x288xf32>
    %c0_35 = arith.constant 0 : index
    %c0_36 = arith.constant 0 : index
    %33 = vector.load %arg3[%c0_35, %c0_36] : memref<8x1xf32, #tpu.memory_space<vmem>>, vector<8x1xf32>
    %34 = vector.broadcast %33 : vector<8x1xf32> to vector<8x288xf32>
    %35 = arith.addf %32, %34 : vector<8x288xf32>
    %cst_37 = arith.constant 0.000000e+00 : f32
    %36 = vector.broadcast %cst_37 : f32 to vector<8x288xf32>
    %37 = arith.maximumf %35, %36 : vector<8x288xf32>
    %c0_38 = arith.constant 0 : index
    %c0_39 = arith.constant 0 : index
    %38 = vector.load %arg4[%c0_38, %c0_39] : memref<1x288xf32, #tpu.memory_space<vmem>>, vector<1x288xf32>
    %39 = vector.broadcast %38 : vector<1x288xf32> to vector<8x288xf32>
    %40 = arith.mulf %37, %39 : vector<8x288xf32>
    %c0_40 = arith.constant 0 : index
    %c0_41 = arith.constant 0 : index
    %c0_42 = arith.constant 0 : index
    %41 = vector.load %arg9[%c0_40, %c0_41, %c0_42] : memref<2x8x288xf32, #tpu.memory_space<vmem>>, vector<1x8x288xf32>
    %42 = vector.shape_cast %41 : vector<1x8x288xf32> to vector<8x288xf32>
    %43 = vector.shape_cast %40 : vector<8x288xf32> to vector<1x8x288xf32>
    tpu.vector_store %arg9[%c0_40, %c0_41, %c0_42], %43 {strides = array<i32>} : memref<2x8x288xf32, #tpu.memory_space<vmem>>, vector<1x8x288xf32>,
    %cst_43 = arith.constant dense<0.000000e+00> : vector<8xf32>
    %44 = vector.multi_reduction <add>, %40, %cst_43 [1] : vector<8x288xf32> to vector<8xf32>
    %45 = vector.shape_cast %44 : vector<8xf32> to vector<8x1xf32>
    %46 = arith.addf %0, %45 : vector<8x1xf32>
    %47 = arith.mulf %40, %40 : vector<8x288xf32>
    %cst_44 = arith.constant dense<0.000000e+00> : vector<8xf32>
    %48 = vector.multi_reduction <add>, %47, %cst_44 [1] : vector<8x288xf32> to vector<8xf32>
    %49 = vector.shape_cast %48 : vector<8xf32> to vector<8x1xf32>
    %50 = arith.addf %1, %49 : vector<8x1xf32>
    %c1_45 = arith.constant 1 : index
    %c0_46 = arith.constant 0 : index
    %c0_47 = arith.constant 0 : index
    %51 = vector.load %arg1[%c1_45, %c0_46, %c0_47] : memref<2x4x342xf32, #tpu.memory_space<vmem>>, vector<1x4x288xf32>
    %52 = vector.shape_cast %51 : vector<1x4x288xf32> to vector<4x288xf32>
    %c0_48 = arith.constant 0 : index
    %c0_49 = arith.constant 0 : index
    %53 = vector.load %arg8[%c0_48, %c0_49] : memref<36x288xf32, #tpu.memory_space<vmem>>, vector<4x288xf32>
    tpu.vector_store %arg8[%c0_48, %c0_49], %52 {strides = array<i32>} : memref<36x288xf32, #tpu.memory_space<vmem>>, vector<4x288xf32>,
    %c1_50 = arith.constant 1 : index
    %c0_51 = arith.constant 0 : index
    %c1_52 = arith.constant 1 : index
    %54 = vector.load %arg1[%c1_50, %c0_51, %c1_52] : memref<2x4x342xf32, #tpu.memory_space<vmem>>, vector<1x4x288xf32>
    %55 = vector.shape_cast %54 : vector<1x4x288xf32> to vector<4x288xf32>
    %c4_53 = arith.constant 4 : index
    %c0_54 = arith.constant 0 : index
    %56 = vector.load %arg8[%c4_53, %c0_54] : memref<36x288xf32, #tpu.memory_space<vmem>>, vector<4x288xf32>
    tpu.vector_store %arg8[%c4_53, %c0_54], %55 {strides = array<i32>} : memref<36x288xf32, #tpu.memory_space<vmem>>, vector<4x288xf32>,
    %c1_55 = arith.constant 1 : index
    %c0_56 = arith.constant 0 : index
    %c2_57 = arith.constant 2 : index
    %57 = vector.load %arg1[%c1_55, %c0_56, %c2_57] : memref<2x4x342xf32, #tpu.memory_space<vmem>>, vector<1x4x288xf32>
    %58 = vector.shape_cast %57 : vector<1x4x288xf32> to vector<4x288xf32>
    %c8_58 = arith.constant 8 : index
    %c0_59 = arith.constant 0 : index
    %59 = vector.load %arg8[%c8_58, %c0_59] : memref<36x288xf32, #tpu.memory_space<vmem>>, vector<4x288xf32>
    tpu.vector_store %arg8[%c8_58, %c0_59], %58 {strides = array<i32>} : memref<36x288xf32, #tpu.memory_space<vmem>>, vector<4x288xf32>,
    %c1_60 = arith.constant 1 : index
    %c0_61 = arith.constant 0 : index
    %c18_62 = arith.constant 18 : index
    %60 = vector.load %arg1[%c1_60, %c0_61, %c18_62] : memref<2x4x342xf32, #tpu.memory_space<vmem>>, vector<1x4x288xf32>
    %61 = vector.shape_cast %60 : vector<1x4x288xf32> to vector<4x288xf32>
    %c12_63 = arith.constant 12 : index
    %c0_64 = arith.constant 0 : index
    %62 = vector.load %arg8[%c12_63, %c0_64] : memref<36x288xf32, #tpu.memory_space<vmem>>, vector<4x288xf32>
    tpu.vector_store %arg8[%c12_63, %c0_64], %61 {strides = array<i32>} : memref<36x288xf32, #tpu.memory_space<vmem>>, vector<4x288xf32>,
    %c1_65 = arith.constant 1 : index
    %c0_66 = arith.constant 0 : index
    %c19_67 = arith.constant 19 : index
    %63 = vector.load %arg1[%c1_65, %c0_66, %c19_67] : memref<2x4x342xf32, #tpu.memory_space<vmem>>, vector<1x4x288xf32>
    %64 = vector.shape_cast %63 : vector<1x4x288xf32> to vector<4x288xf32>
    %c16_68 = arith.constant 16 : index
    %c0_69 = arith.constant 0 : index
    %65 = vector.load %arg8[%c16_68, %c0_69] : memref<36x288xf32, #tpu.memory_space<vmem>>, vector<4x288xf32>
    tpu.vector_store %arg8[%c16_68, %c0_69], %64 {strides = array<i32>} : memref<36x288xf32, #tpu.memory_space<vmem>>, vector<4x288xf32>,
    %c1_70 = arith.constant 1 : index
    %c0_71 = arith.constant 0 : index
    %c20_72 = arith.constant 20 : index
    %66 = vector.load %arg1[%c1_70, %c0_71, %c20_72] : memref<2x4x342xf32, #tpu.memory_space<vmem>>, vector<1x4x288xf32>
    %67 = vector.shape_cast %66 : vector<1x4x288xf32> to vector<4x288xf32>
    %c20_73 = arith.constant 20 : index
    %c0_74 = arith.constant 0 : index
    %68 = vector.load %arg8[%c20_73, %c0_74] : memref<36x288xf32, #tpu.memory_space<vmem>>, vector<4x288xf32>
    tpu.vector_store %arg8[%c20_73, %c0_74], %67 {strides = array<i32>} : memref<36x288xf32, #tpu.memory_space<vmem>>, vector<4x288xf32>,
    %c1_75 = arith.constant 1 : index
    %c0_76 = arith.constant 0 : index
    %c36_77 = arith.constant 36 : index
    %69 = vector.load %arg1[%c1_75, %c0_76, %c36_77] : memref<2x4x342xf32, #tpu.memory_space<vmem>>, vector<1x4x288xf32>
    %70 = vector.shape_cast %69 : vector<1x4x288xf32> to vector<4x288xf32>
    %c24_78 = arith.constant 24 : index
    %c0_79 = arith.constant 0 : index
    %71 = vector.load %arg8[%c24_78, %c0_79] : memref<36x288xf32, #tpu.memory_space<vmem>>, vector<4x288xf32>
    tpu.vector_store %arg8[%c24_78, %c0_79], %70 {strides = array<i32>} : memref<36x288xf32, #tpu.memory_space<vmem>>, vector<4x288xf32>,
    %c1_80 = arith.constant 1 : index
    %c0_81 = arith.constant 0 : index
    %c37_82 = arith.constant 37 : index
    %72 = vector.load %arg1[%c1_80, %c0_81, %c37_82] : memref<2x4x342xf32, #tpu.memory_space<vmem>>, vector<1x4x288xf32>
    %73 = vector.shape_cast %72 : vector<1x4x288xf32> to vector<4x288xf32>
    %c28_83 = arith.constant 28 : index
    %c0_84 = arith.constant 0 : index
    %74 = vector.load %arg8[%c28_83, %c0_84] : memref<36x288xf32, #tpu.memory_space<vmem>>, vector<4x288xf32>
    tpu.vector_store %arg8[%c28_83, %c0_84], %73 {strides = array<i32>} : memref<36x288xf32, #tpu.memory_space<vmem>>, vector<4x288xf32>,
    %c1_85 = arith.constant 1 : index
    %c0_86 = arith.constant 0 : index
    %c38_87 = arith.constant 38 : index
    %75 = vector.load %arg1[%c1_85, %c0_86, %c38_87] : memref<2x4x342xf32, #tpu.memory_space<vmem>>, vector<1x4x288xf32>
    %76 = vector.shape_cast %75 : vector<1x4x288xf32> to vector<4x288xf32>
    %c32_88 = arith.constant 32 : index
    %c0_89 = arith.constant 0 : index
    %77 = vector.load %arg8[%c32_88, %c0_89] : memref<36x288xf32, #tpu.memory_space<vmem>>, vector<4x288xf32>
    tpu.vector_store %arg8[%c32_88, %c0_89], %76 {strides = array<i32>} : memref<36x288xf32, #tpu.memory_space<vmem>>, vector<4x288xf32>,
    %c0_90 = arith.constant 0 : index
    %c0_91 = arith.constant 0 : index
    %78 = vector.load %arg2[%c0_90, %c0_91] : memref<8x36xbf16, #tpu.memory_space<vmem>>, vector<8x36xbf16>
    %c0_92 = arith.constant 0 : index
    %c0_93 = arith.constant 0 : index
    %79 = vector.load %arg8[%c0_92, %c0_93] : memref<36x288xf32, #tpu.memory_space<vmem>>, vector<36x288xf32>
    %80 = arith.truncf %79 : vector<36x288xf32> to vector<36x288xbf16>
    %cst_94 = arith.constant dense<0.000000e+00> : vector<8x288xf32>
    %81 = tpu.matmul %78, %80, %cst_94 {dimension_numbers = #tpu.dot_dimension_numbers<[1], [0], [0], [1], [0, 0, 1, 1], [], []>} : vector<8x36xbf16>, vector<36x288xbf16>, vector<8x288xf32> -> vector<8x288xf32>
    %c0_95 = arith.constant 0 : index
    %c0_96 = arith.constant 0 : index
    %82 = vector.load %arg3[%c0_95, %c0_96] : memref<8x1xf32, #tpu.memory_space<vmem>>, vector<8x1xf32>
    %83 = vector.broadcast %82 : vector<8x1xf32> to vector<8x288xf32>
    %84 = arith.addf %81, %83 : vector<8x288xf32>
    %cst_97 = arith.constant 0.000000e+00 : f32
    %85 = vector.broadcast %cst_97 : f32 to vector<8x288xf32>
    %86 = arith.maximumf %84, %85 : vector<8x288xf32>
    %c0_98 = arith.constant 0 : index
    %c0_99 = arith.constant 0 : index
    %87 = vector.load %arg4[%c0_98, %c0_99] : memref<1x288xf32, #tpu.memory_space<vmem>>, vector<1x288xf32>
    %88 = vector.broadcast %87 : vector<1x288xf32> to vector<8x288xf32>
    %89 = arith.mulf %86, %88 : vector<8x288xf32>
    %c1_100 = arith.constant 1 : index
    %c0_101 = arith.constant 0 : index
    %c0_102 = arith.constant 0 : index
    %90 = vector.load %arg9[%c1_100, %c0_101, %c0_102] : memref<2x8x288xf32, #tpu.memory_space<vmem>>, vector<1x8x288xf32>
    %91 = vector.shape_cast %90 : vector<1x8x288xf32> to vector<8x288xf32>
    %92 = vector.shape_cast %89 : vector<8x288xf32> to vector<1x8x288xf32>
    tpu.vector_store %arg9[%c1_100, %c0_101, %c0_102], %92 {strides = array<i32>} : memref<2x8x288xf32, #tpu.memory_space<vmem>>, vector<1x8x288xf32>,
    %cst_103 = arith.constant dense<0.000000e+00> : vector<8xf32>
    %93 = vector.multi_reduction <add>, %89, %cst_103 [1] : vector<8x288xf32> to vector<8xf32>
    %94 = vector.shape_cast %93 : vector<8xf32> to vector<8x1xf32>
    %95 = arith.addf %46, %94 : vector<8x1xf32>
    %96 = arith.mulf %89, %89 : vector<8x288xf32>
    %cst_104 = arith.constant dense<0.000000e+00> : vector<8xf32>
    %97 = vector.multi_reduction <add>, %96, %cst_104 [1] : vector<8x288xf32> to vector<8xf32>
    %98 = vector.shape_cast %97 : vector<8xf32> to vector<8x1xf32>
    %99 = arith.addf %50, %98 : vector<8x1xf32>
    %cst_105 = arith.constant 0.001953125 : f32
    %100 = vector.broadcast %cst_105 : f32 to vector<8x1xf32>
    %101 = arith.mulf %95, %100 : vector<8x1xf32>
    %cst_106 = arith.constant 0.001953125 : f32
    %102 = vector.broadcast %cst_106 : f32 to vector<8x1xf32>
    %103 = arith.mulf %99, %102 : vector<8x1xf32>
    %104 = arith.mulf %101, %101 : vector<8x1xf32>
    %105 = arith.subf %103, %104 : vector<8x1xf32>
    %cst_107 = arith.constant 0.000000e+00 : f32
    %106 = vector.broadcast %cst_107 : f32 to vector<8x1xf32>
    %107 = arith.maximumf %105, %106 : vector<8x1xf32>
    %cst_108 = arith.constant 9.99999974E-6 : f32
    %108 = vector.broadcast %cst_108 : f32 to vector<8x1xf32>
    %109 = arith.addf %107, %108 : vector<8x1xf32>
    %110 = math.rsqrt %109 : vector<8x1xf32>
    %c0_109 = arith.constant 0 : index
    %c0_110 = arith.constant 0 : index
    %111 = vector.load %arg5[%c0_109, %c0_110] : memref<8x1xf32, #tpu.memory_space<vmem>>, vector<8x1xf32>
    %112 = arith.mulf %111, %110 : vector<8x1xf32>
    %c0_111 = arith.constant 0 : index
    %c0_112 = arith.constant 0 : index
    %113 = vector.load %arg6[%c0_111, %c0_112] : memref<8x1xf32, #tpu.memory_space<vmem>>, vector<8x1xf32>
    %114 = arith.mulf %101, %112 : vector<8x1xf32>
    %115 = arith.subf %113, %114 : vector<8x1xf32>
    %c0_113 = arith.constant 0 : index
    %c0_114 = arith.constant 0 : index
    %c0_115 = arith.constant 0 : index
    %116 = vector.load %arg9[%c0_113, %c0_114, %c0_115] : memref<2x8x288xf32, #tpu.memory_space<vmem>>, vector<1x8x288xf32>
    %117 = vector.shape_cast %116 : vector<1x8x288xf32> to vector<8x288xf32>
    %118 = vector.broadcast %112 : vector<8x1xf32> to vector<8x288xf32>
    %119 = arith.mulf %117, %118 : vector<8x288xf32>
    %120 = vector.broadcast %115 : vector<8x1xf32> to vector<8x288xf32>
    %121 = arith.addf %119, %120 : vector<8x288xf32>
    %c0_116 = arith.constant 0 : index
    %c0_117 = arith.constant 0 : index
    %c0_118 = arith.constant 0 : index
    %122 = vector.load %arg9[%c0_116, %c0_117, %c0_118] : memref<2x8x288xf32, #tpu.memory_space<vmem>>, vector<1x8x288xf32>
    %123 = vector.shape_cast %122 : vector<1x8x288xf32> to vector<8x288xf32>
    %124 = vector.shape_cast %121 : vector<8x288xf32> to vector<1x8x288xf32>
    tpu.vector_store %arg9[%c0_116, %c0_117, %c0_118], %124 {strides = array<i32>} : memref<2x8x288xf32, #tpu.memory_space<vmem>>, vector<1x8x288xf32>,
    %c0_119 = arith.constant 0 : index
    %c0_120 = arith.constant 0 : index
    %c0_121 = arith.constant 0 : index
    %125 = vector.load %arg9[%c0_119, %c0_120, %c0_121] : memref<2x8x288xf32, #tpu.memory_space<vmem>>, vector<1x8x16xf32>
    %126 = vector.shape_cast %125 : vector<1x8x16xf32> to vector<8x16xf32>
    %c0_122 = arith.constant 0 : index
    %c0_123 = arith.constant 0 : index
    %c0_124 = arith.constant 0 : index
    %127 = vector.load %arg7[%c0_122, %c0_123, %c0_124] : memref<2x8x256xf32, #tpu.memory_space<vmem>>, vector<1x8x16xf32>
    %128 = vector.shape_cast %127 : vector<1x8x16xf32> to vector<8x16xf32>
    %129 = vector.shape_cast %126 : vector<8x16xf32> to vector<1x8x16xf32>
    tpu.vector_store %arg7[%c0_122, %c0_123, %c0_124], %129 {strides = array<i32>} : memref<2x8x256xf32, #tpu.memory_space<vmem>>, vector<1x8x16xf32>,
    %c0_125 = arith.constant 0 : index
    %c0_126 = arith.constant 0 : index
    %c18_127 = arith.constant 18 : index
    %130 = vector.load %arg9[%c0_125, %c0_126, %c18_127] : memref<2x8x288xf32, #tpu.memory_space<vmem>>, vector<1x8x16xf32>
    %131 = vector.shape_cast %130 : vector<1x8x16xf32> to vector<8x16xf32>
    %c0_128 = arith.constant 0 : index
    %c0_129 = arith.constant 0 : index
    %c16_130 = arith.constant 16 : index
    %132 = vector.load %arg7[%c0_128, %c0_129, %c16_130] : memref<2x8x256xf32, #tpu.memory_space<vmem>>, vector<1x8x16xf32>
    %133 = vector.shape_cast %132 : vector<1x8x16xf32> to vector<8x16xf32>
    %134 = vector.shape_cast %131 : vector<8x16xf32> to vector<1x8x16xf32>
    tpu.vector_store %arg7[%c0_128, %c0_129, %c16_130], %134 {strides = array<i32>} : memref<2x8x256xf32, #tpu.memory_space<vmem>>, vector<1x8x16xf32>,
    %c0_131 = arith.constant 0 : index
    %c0_132 = arith.constant 0 : index
    %c36_133 = arith.constant 36 : index
    %135 = vector.load %arg9[%c0_131, %c0_132, %c36_133] : memref<2x8x288xf32, #tpu.memory_space<vmem>>, vector<1x8x16xf32>
    %136 = vector.shape_cast %135 : vector<1x8x16xf32> to vector<8x16xf32>
    %c0_134 = arith.constant 0 : index
    %c0_135 = arith.constant 0 : index
    %c32_136 = arith.constant 32 : index
    %137 = vector.load %arg7[%c0_134, %c0_135, %c32_136] : memref<2x8x256xf32, #tpu.memory_space<vmem>>, vector<1x8x16xf32>
    %138 = vector.shape_cast %137 : vector<1x8x16xf32> to vector<8x16xf32>
    %139 = vector.shape_cast %136 : vector<8x16xf32> to vector<1x8x16xf32>
    tpu.vector_store %arg7[%c0_134, %c0_135, %c32_136], %139 {strides = array<i32>} : memref<2x8x256xf32, #tpu.memory_space<vmem>>, vector<1x8x16xf32>,
    %c0_137 = arith.constant 0 : index
    %c0_138 = arith.constant 0 : index
    %c54 = arith.constant 54 : index
    %140 = vector.load %arg9[%c0_137, %c0_138, %c54] : memref<2x8x288xf32, #tpu.memory_space<vmem>>, vector<1x8x16xf32>
    %141 = vector.shape_cast %140 : vector<1x8x16xf32> to vector<8x16xf32>
    %c0_139 = arith.constant 0 : index
    %c0_140 = arith.constant 0 : index
    %c48 = arith.constant 48 : index
    %142 = vector.load %arg7[%c0_139, %c0_140, %c48] : memref<2x8x256xf32, #tpu.memory_space<vmem>>, vector<1x8x16xf32>
    %143 = vector.shape_cast %142 : vector<1x8x16xf32> to vector<8x16xf32>
    %144 = vector.shape_cast %141 : vector<8x16xf32> to vector<1x8x16xf32>
    tpu.vector_store %arg7[%c0_139, %c0_140, %c48], %144 {strides = array<i32>} : memref<2x8x256xf32, #tpu.memory_space<vmem>>, vector<1x8x16xf32>,
    %c0_141 = arith.constant 0 : index
    %c0_142 = arith.constant 0 : index
    %c72 = arith.constant 72 : index
    %145 = vector.load %arg9[%c0_141, %c0_142, %c72] : memref<2x8x288xf32, #tpu.memory_space<vmem>>, vector<1x8x16xf32>
    %146 = vector.shape_cast %145 : vector<1x8x16xf32> to vector<8x16xf32>
    %c0_143 = arith.constant 0 : index
    %c0_144 = arith.constant 0 : index
    %c64 = arith.constant 64 : index
    %147 = vector.load %arg7[%c0_143, %c0_144, %c64] : memref<2x8x256xf32, #tpu.memory_space<vmem>>, vector<1x8x16xf32>
    %148 = vector.shape_cast %147 : vector<1x8x16xf32> to vector<8x16xf32>
    %149 = vector.shape_cast %146 : vector<8x16xf32> to vector<1x8x16xf32>
    tpu.vector_store %arg7[%c0_143, %c0_144, %c64], %149 {strides = array<i32>} : memref<2x8x256xf32, #tpu.memory_space<vmem>>, vector<1x8x16xf32>,
    %c0_145 = arith.constant 0 : index
    %c0_146 = arith.constant 0 : index
    %c90 = arith.constant 90 : index
    %150 = vector.load %arg9[%c0_145, %c0_146, %c90] : memref<2x8x288xf32, #tpu.memory_space<vmem>>, vector<1x8x16xf32>
    %151 = vector.shape_cast %150 : vector<1x8x16xf32> to vector<8x16xf32>
    %c0_147 = arith.constant 0 : index
    %c0_148 = arith.constant 0 : index
    %c80 = arith.constant 80 : index
    %152 = vector.load %arg7[%c0_147, %c0_148, %c80] : memref<2x8x256xf32, #tpu.memory_space<vmem>>, vector<1x8x16xf32>
    %153 = vector.shape_cast %152 : vector<1x8x16xf32> to vector<8x16xf32>
    %154 = vector.shape_cast %151 : vector<8x16xf32> to vector<1x8x16xf32>
    tpu.vector_store %arg7[%c0_147, %c0_148, %c80], %154 {strides = array<i32>} : memref<2x8x256xf32, #tpu.memory_space<vmem>>, vector<1x8x16xf32>,
    %c0_149 = arith.constant 0 : index
    %c0_150 = arith.constant 0 : index
    %c108 = arith.constant 108 : index
    %155 = vector.load %arg9[%c0_149, %c0_150, %c108] : memref<2x8x288xf32, #tpu.memory_space<vmem>>, vector<1x8x16xf32>
    %156 = vector.shape_cast %155 : vector<1x8x16xf32> to vector<8x16xf32>
    %c0_151 = arith.constant 0 : index
    %c0_152 = arith.constant 0 : index
    %c96 = arith.constant 96 : index
    %157 = vector.load %arg7[%c0_151, %c0_152, %c96] : memref<2x8x256xf32, #tpu.memory_space<vmem>>, vector<1x8x16xf32>
    %158 = vector.shape_cast %157 : vector<1x8x16xf32> to vector<8x16xf32>
    %159 = vector.shape_cast %156 : vector<8x16xf32> to vector<1x8x16xf32>
    tpu.vector_store %arg7[%c0_151, %c0_152, %c96], %159 {strides = array<i32>} : memref<2x8x256xf32, #tpu.memory_space<vmem>>, vector<1x8x16xf32>,
    %c0_153 = arith.constant 0 : index
    %c0_154 = arith.constant 0 : index
    %c126 = arith.constant 126 : index
    %160 = vector.load %arg9[%c0_153, %c0_154, %c126] : memref<2x8x288xf32, #tpu.memory_space<vmem>>, vector<1x8x16xf32>
    %161 = vector.shape_cast %160 : vector<1x8x16xf32> to vector<8x16xf32>
    %c0_155 = arith.constant 0 : index
    %c0_156 = arith.constant 0 : index
    %c112 = arith.constant 112 : index
    %162 = vector.load %arg7[%c0_155, %c0_156, %c112] : memref<2x8x256xf32, #tpu.memory_space<vmem>>, vector<1x8x16xf32>
    %163 = vector.shape_cast %162 : vector<1x8x16xf32> to vector<8x16xf32>
    %164 = vector.shape_cast %161 : vector<8x16xf32> to vector<1x8x16xf32>
    tpu.vector_store %arg7[%c0_155, %c0_156, %c112], %164 {strides = array<i32>} : memref<2x8x256xf32, #tpu.memory_space<vmem>>, vector<1x8x16xf32>,
    %c0_157 = arith.constant 0 : index
    %c0_158 = arith.constant 0 : index
    %c144 = arith.constant 144 : index
    %165 = vector.load %arg9[%c0_157, %c0_158, %c144] : memref<2x8x288xf32, #tpu.memory_space<vmem>>, vector<1x8x16xf32>
    %166 = vector.shape_cast %165 : vector<1x8x16xf32> to vector<8x16xf32>
    %c0_159 = arith.constant 0 : index
    %c0_160 = arith.constant 0 : index
    %c128 = arith.constant 128 : index
    %167 = vector.load %arg7[%c0_159, %c0_160, %c128] : memref<2x8x256xf32, #tpu.memory_space<vmem>>, vector<1x8x16xf32>
    %168 = vector.shape_cast %167 : vector<1x8x16xf32> to vector<8x16xf32>
    %169 = vector.shape_cast %166 : vector<8x16xf32> to vector<1x8x16xf32>
    tpu.vector_store %arg7[%c0_159, %c0_160, %c128], %169 {strides = array<i32>} : memref<2x8x256xf32, #tpu.memory_space<vmem>>, vector<1x8x16xf32>,
    %c0_161 = arith.constant 0 : index
    %c0_162 = arith.constant 0 : index
    %c162 = arith.constant 162 : index
    %170 = vector.load %arg9[%c0_161, %c0_162, %c162] : memref<2x8x288xf32, #tpu.memory_space<vmem>>, vector<1x8x16xf32>
    %171 = vector.shape_cast %170 : vector<1x8x16xf32> to vector<8x16xf32>
    %c0_163 = arith.constant 0 : index
    %c0_164 = arith.constant 0 : index
    %c144_165 = arith.constant 144 : index
    %172 = vector.load %arg7[%c0_163, %c0_164, %c144_165] : memref<2x8x256xf32, #tpu.memory_space<vmem>>, vector<1x8x16xf32>
    %173 = vector.shape_cast %172 : vector<1x8x16xf32> to vector<8x16xf32>
    %174 = vector.shape_cast %171 : vector<8x16xf32> to vector<1x8x16xf32>
    tpu.vector_store %arg7[%c0_163, %c0_164, %c144_165], %174 {strides = array<i32>} : memref<2x8x256xf32, #tpu.memory_space<vmem>>, vector<1x8x16xf32>,
    %c0_166 = arith.constant 0 : index
    %c0_167 = arith.constant 0 : index
    %c180 = arith.constant 180 : index
    %175 = vector.load %arg9[%c0_166, %c0_167, %c180] : memref<2x8x288xf32, #tpu.memory_space<vmem>>, vector<1x8x16xf32>
    %176 = vector.shape_cast %175 : vector<1x8x16xf32> to vector<8x16xf32>
    %c0_168 = arith.constant 0 : index
    %c0_169 = arith.constant 0 : index
    %c160 = arith.constant 160 : index
    %177 = vector.load %arg7[%c0_168, %c0_169, %c160] : memref<2x8x256xf32, #tpu.memory_space<vmem>>, vector<1x8x16xf32>
    %178 = vector.shape_cast %177 : vector<1x8x16xf32> to vector<8x16xf32>
    %179 = vector.shape_cast %176 : vector<8x16xf32> to vector<1x8x16xf32>
    tpu.vector_store %arg7[%c0_168, %c0_169, %c160], %179 {strides = array<i32>} : memref<2x8x256xf32, #tpu.memory_space<vmem>>, vector<1x8x16xf32>,
    %c0_170 = arith.constant 0 : index
    %c0_171 = arith.constant 0 : index
    %c198 = arith.constant 198 : index
    %180 = vector.load %arg9[%c0_170, %c0_171, %c198] : memref<2x8x288xf32, #tpu.memory_space<vmem>>, vector<1x8x16xf32>
    %181 = vector.shape_cast %180 : vector<1x8x16xf32> to vector<8x16xf32>
    %c0_172 = arith.constant 0 : index
    %c0_173 = arith.constant 0 : index
    %c176 = arith.constant 176 : index
    %182 = vector.load %arg7[%c0_172, %c0_173, %c176] : memref<2x8x256xf32, #tpu.memory_space<vmem>>, vector<1x8x16xf32>
    %183 = vector.shape_cast %182 : vector<1x8x16xf32> to vector<8x16xf32>
    %184 = vector.shape_cast %181 : vector<8x16xf32> to vector<1x8x16xf32>
    tpu.vector_store %arg7[%c0_172, %c0_173, %c176], %184 {strides = array<i32>} : memref<2x8x256xf32, #tpu.memory_space<vmem>>, vector<1x8x16xf32>,
    %c0_174 = arith.constant 0 : index
    %c0_175 = arith.constant 0 : index
    %c216 = arith.constant 216 : index
    %185 = vector.load %arg9[%c0_174, %c0_175, %c216] : memref<2x8x288xf32, #tpu.memory_space<vmem>>, vector<1x8x16xf32>
    %186 = vector.shape_cast %185 : vector<1x8x16xf32> to vector<8x16xf32>
    %c0_176 = arith.constant 0 : index
    %c0_177 = arith.constant 0 : index
    %c192 = arith.constant 192 : index
    %187 = vector.load %arg7[%c0_176, %c0_177, %c192] : memref<2x8x256xf32, #tpu.memory_space<vmem>>, vector<1x8x16xf32>
    %188 = vector.shape_cast %187 : vector<1x8x16xf32> to vector<8x16xf32>
    %189 = vector.shape_cast %186 : vector<8x16xf32> to vector<1x8x16xf32>
    tpu.vector_store %arg7[%c0_176, %c0_177, %c192], %189 {strides = array<i32>} : memref<2x8x256xf32, #tpu.memory_space<vmem>>, vector<1x8x16xf32>,
    %c0_178 = arith.constant 0 : index
    %c0_179 = arith.constant 0 : index
    %c234 = arith.constant 234 : index
    %190 = vector.load %arg9[%c0_178, %c0_179, %c234] : memref<2x8x288xf32, #tpu.memory_space<vmem>>, vector<1x8x16xf32>
    %191 = vector.shape_cast %190 : vector<1x8x16xf32> to vector<8x16xf32>
    %c0_180 = arith.constant 0 : index
    %c0_181 = arith.constant 0 : index
    %c208 = arith.constant 208 : index
    %192 = vector.load %arg7[%c0_180, %c0_181, %c208] : memref<2x8x256xf32, #tpu.memory_space<vmem>>, vector<1x8x16xf32>
    %193 = vector.shape_cast %192 : vector<1x8x16xf32> to vector<8x16xf32>
    %194 = vector.shape_cast %191 : vector<8x16xf32> to vector<1x8x16xf32>
    tpu.vector_store %arg7[%c0_180, %c0_181, %c208], %194 {strides = array<i32>} : memref<2x8x256xf32, #tpu.memory_space<vmem>>, vector<1x8x16xf32>,
    %c0_182 = arith.constant 0 : index
    %c0_183 = arith.constant 0 : index
    %c252 = arith.constant 252 : index
    %195 = vector.load %arg9[%c0_182, %c0_183, %c252] : memref<2x8x288xf32, #tpu.memory_space<vmem>>, vector<1x8x16xf32>
    %196 = vector.shape_cast %195 : vector<1x8x16xf32> to vector<8x16xf32>
    %c0_184 = arith.constant 0 : index
    %c0_185 = arith.constant 0 : index
    %c224 = arith.constant 224 : index
    %197 = vector.load %arg7[%c0_184, %c0_185, %c224] : memref<2x8x256xf32, #tpu.memory_space<vmem>>, vector<1x8x16xf32>
    %198 = vector.shape_cast %197 : vector<1x8x16xf32> to vector<8x16xf32>
    %199 = vector.shape_cast %196 : vector<8x16xf32> to vector<1x8x16xf32>
    tpu.vector_store %arg7[%c0_184, %c0_185, %c224], %199 {strides = array<i32>} : memref<2x8x256xf32, #tpu.memory_space<vmem>>, vector<1x8x16xf32>,
    %c0_186 = arith.constant 0 : index
    %c0_187 = arith.constant 0 : index
    %c270 = arith.constant 270 : index
    %200 = vector.load %arg9[%c0_186, %c0_187, %c270] : memref<2x8x288xf32, #tpu.memory_space<vmem>>, vector<1x8x16xf32>
    %201 = vector.shape_cast %200 : vector<1x8x16xf32> to vector<8x16xf32>
    %c0_188 = arith.constant 0 : index
    %c0_189 = arith.constant 0 : index
    %c240 = arith.constant 240 : index
    %202 = vector.load %arg7[%c0_188, %c0_189, %c240] : memref<2x8x256xf32, #tpu.memory_space<vmem>>, vector<1x8x16xf32>
    %203 = vector.shape_cast %202 : vector<1x8x16xf32> to vector<8x16xf32>
    %204 = vector.shape_cast %201 : vector<8x16xf32> to vector<1x8x16xf32>
    tpu.vector_store %arg7[%c0_188, %c0_189, %c240], %204 {strides = array<i32>} : memref<2x8x256xf32, #tpu.memory_space<vmem>>, vector<1x8x16xf32>,
    %c1_190 = arith.constant 1 : index
    %c0_191 = arith.constant 0 : index
    %c0_192 = arith.constant 0 : index
    %205 = vector.load %arg9[%c1_190, %c0_191, %c0_192] : memref<2x8x288xf32, #tpu.memory_space<vmem>>, vector<1x8x288xf32>
    %206 = vector.shape_cast %205 : vector<1x8x288xf32> to vector<8x288xf32>
    %207 = vector.broadcast %112 : vector<8x1xf32> to vector<8x288xf32>
    %208 = arith.mulf %206, %207 : vector<8x288xf32>
    %209 = vector.broadcast %115 : vector<8x1xf32> to vector<8x288xf32>
    %210 = arith.addf %208, %209 : vector<8x288xf32>
    %c1_193 = arith.constant 1 : index
    %c0_194 = arith.constant 0 : index
    %c0_195 = arith.constant 0 : index
    %211 = vector.load %arg9[%c1_193, %c0_194, %c0_195] : memref<2x8x288xf32, #tpu.memory_space<vmem>>, vector<1x8x288xf32>
    %212 = vector.shape_cast %211 : vector<1x8x288xf32> to vector<8x288xf32>
    %213 = vector.shape_cast %210 : vector<8x288xf32> to vector<1x8x288xf32>
    tpu.vector_store %arg9[%c1_193, %c0_194, %c0_195], %213 {strides = array<i32>} : memref<2x8x288xf32, #tpu.memory_space<vmem>>, vector<1x8x288xf32>,
    %c1_196 = arith.constant 1 : index
    %c0_197 = arith.constant 0 : index
    %c0_198 = arith.constant 0 : index
    %214 = vector.load %arg9[%c1_196, %c0_197, %c0_198] : memref<2x8x288xf32, #tpu.memory_space<vmem>>, vector<1x8x16xf32>
    %215 = vector.shape_cast %214 : vector<1x8x16xf32> to vector<8x16xf32>
    %c1_199 = arith.constant 1 : index
    %c0_200 = arith.constant 0 : index
    %c0_201 = arith.constant 0 : index
    %216 = vector.load %arg7[%c1_199, %c0_200, %c0_201] : memref<2x8x256xf32, #tpu.memory_space<vmem>>, vector<1x8x16xf32>
    %217 = vector.shape_cast %216 : vector<1x8x16xf32> to vector<8x16xf32>
    %218 = vector.shape_cast %215 : vector<8x16xf32> to vector<1x8x16xf32>
    tpu.vector_store %arg7[%c1_199, %c0_200, %c0_201], %218 {strides = array<i32>} : memref<2x8x256xf32, #tpu.memory_space<vmem>>, vector<1x8x16xf32>,
    %c1_202 = arith.constant 1 : index
    %c0_203 = arith.constant 0 : index
    %c18_204 = arith.constant 18 : index
    %219 = vector.load %arg9[%c1_202, %c0_203, %c18_204] : memref<2x8x288xf32, #tpu.memory_space<vmem>>, vector<1x8x16xf32>
    %220 = vector.shape_cast %219 : vector<1x8x16xf32> to vector<8x16xf32>
    %c1_205 = arith.constant 1 : index
    %c0_206 = arith.constant 0 : index
    %c16_207 = arith.constant 16 : index
    %221 = vector.load %arg7[%c1_205, %c0_206, %c16_207] : memref<2x8x256xf32, #tpu.memory_space<vmem>>, vector<1x8x16xf32>
    %222 = vector.shape_cast %221 : vector<1x8x16xf32> to vector<8x16xf32>
    %223 = vector.shape_cast %220 : vector<8x16xf32> to vector<1x8x16xf32>
    tpu.vector_store %arg7[%c1_205, %c0_206, %c16_207], %223 {strides = array<i32>} : memref<2x8x256xf32, #tpu.memory_space<vmem>>, vector<1x8x16xf32>,
    %c1_208 = arith.constant 1 : index
    %c0_209 = arith.constant 0 : index
    %c36_210 = arith.constant 36 : index
    %224 = vector.load %arg9[%c1_208, %c0_209, %c36_210] : memref<2x8x288xf32, #tpu.memory_space<vmem>>, vector<1x8x16xf32>
    %225 = vector.shape_cast %224 : vector<1x8x16xf32> to vector<8x16xf32>
    %c1_211 = arith.constant 1 : index
    %c0_212 = arith.constant 0 : index
    %c32_213 = arith.constant 32 : index
    %226 = vector.load %arg7[%c1_211, %c0_212, %c32_213] : memref<2x8x256xf32, #tpu.memory_space<vmem>>, vector<1x8x16xf32>
    %227 = vector.shape_cast %226 : vector<1x8x16xf32> to vector<8x16xf32>
    %228 = vector.shape_cast %225 : vector<8x16xf32> to vector<1x8x16xf32>
    tpu.vector_store %arg7[%c1_211, %c0_212, %c32_213], %228 {strides = array<i32>} : memref<2x8x256xf32, #tpu.memory_space<vmem>>, vector<1x8x16xf32>,
    %c1_214 = arith.constant 1 : index
    %c0_215 = arith.constant 0 : index
    %c54_216 = arith.constant 54 : index
    %229 = vector.load %arg9[%c1_214, %c0_215, %c54_216] : memref<2x8x288xf32, #tpu.memory_space<vmem>>, vector<1x8x16xf32>
    %230 = vector.shape_cast %229 : vector<1x8x16xf32> to vector<8x16xf32>
    %c1_217 = arith.constant 1 : index
    %c0_218 = arith.constant 0 : index
    %c48_219 = arith.constant 48 : index
    %231 = vector.load %arg7[%c1_217, %c0_218, %c48_219] : memref<2x8x256xf32, #tpu.memory_space<vmem>>, vector<1x8x16xf32>
    %232 = vector.shape_cast %231 : vector<1x8x16xf32> to vector<8x16xf32>
    %233 = vector.shape_cast %230 : vector<8x16xf32> to vector<1x8x16xf32>
    tpu.vector_store %arg7[%c1_217, %c0_218, %c48_219], %233 {strides = array<i32>} : memref<2x8x256xf32, #tpu.memory_space<vmem>>, vector<1x8x16xf32>,
    %c1_220 = arith.constant 1 : index
    %c0_221 = arith.constant 0 : index
    %c72_222 = arith.constant 72 : index
    %234 = vector.load %arg9[%c1_220, %c0_221, %c72_222] : memref<2x8x288xf32, #tpu.memory_space<vmem>>, vector<1x8x16xf32>
    %235 = vector.shape_cast %234 : vector<1x8x16xf32> to vector<8x16xf32>
    %c1_223 = arith.constant 1 : index
    %c0_224 = arith.constant 0 : index
    %c64_225 = arith.constant 64 : index
    %236 = vector.load %arg7[%c1_223, %c0_224, %c64_225] : memref<2x8x256xf32, #tpu.memory_space<vmem>>, vector<1x8x16xf32>
    %237 = vector.shape_cast %236 : vector<1x8x16xf32> to vector<8x16xf32>
    %238 = vector.shape_cast %235 : vector<8x16xf32> to vector<1x8x16xf32>
    tpu.vector_store %arg7[%c1_223, %c0_224, %c64_225], %238 {strides = array<i32>} : memref<2x8x256xf32, #tpu.memory_space<vmem>>, vector<1x8x16xf32>,
    %c1_226 = arith.constant 1 : index
    %c0_227 = arith.constant 0 : index
    %c90_228 = arith.constant 90 : index
    %239 = vector.load %arg9[%c1_226, %c0_227, %c90_228] : memref<2x8x288xf32, #tpu.memory_space<vmem>>, vector<1x8x16xf32>
    %240 = vector.shape_cast %239 : vector<1x8x16xf32> to vector<8x16xf32>
    %c1_229 = arith.constant 1 : index
    %c0_230 = arith.constant 0 : index
    %c80_231 = arith.constant 80 : index
    %241 = vector.load %arg7[%c1_229, %c0_230, %c80_231] : memref<2x8x256xf32, #tpu.memory_space<vmem>>, vector<1x8x16xf32>
    %242 = vector.shape_cast %241 : vector<1x8x16xf32> to vector<8x16xf32>
    %243 = vector.shape_cast %240 : vector<8x16xf32> to vector<1x8x16xf32>
    tpu.vector_store %arg7[%c1_229, %c0_230, %c80_231], %243 {strides = array<i32>} : memref<2x8x256xf32, #tpu.memory_space<vmem>>, vector<1x8x16xf32>,
    %c1_232 = arith.constant 1 : index
    %c0_233 = arith.constant 0 : index
    %c108_234 = arith.constant 108 : index
    %244 = vector.load %arg9[%c1_232, %c0_233, %c108_234] : memref<2x8x288xf32, #tpu.memory_space<vmem>>, vector<1x8x16xf32>
    %245 = vector.shape_cast %244 : vector<1x8x16xf32> to vector<8x16xf32>
    %c1_235 = arith.constant 1 : index
    %c0_236 = arith.constant 0 : index
    %c96_237 = arith.constant 96 : index
    %246 = vector.load %arg7[%c1_235, %c0_236, %c96_237] : memref<2x8x256xf32, #tpu.memory_space<vmem>>, vector<1x8x16xf32>
    %247 = vector.shape_cast %246 : vector<1x8x16xf32> to vector<8x16xf32>
    %248 = vector.shape_cast %245 : vector<8x16xf32> to vector<1x8x16xf32>
    tpu.vector_store %arg7[%c1_235, %c0_236, %c96_237], %248 {strides = array<i32>} : memref<2x8x256xf32, #tpu.memory_space<vmem>>, vector<1x8x16xf32>,
    %c1_238 = arith.constant 1 : index
    %c0_239 = arith.constant 0 : index
    %c126_240 = arith.constant 126 : index
    %249 = vector.load %arg9[%c1_238, %c0_239, %c126_240] : memref<2x8x288xf32, #tpu.memory_space<vmem>>, vector<1x8x16xf32>
    %250 = vector.shape_cast %249 : vector<1x8x16xf32> to vector<8x16xf32>
    %c1_241 = arith.constant 1 : index
    %c0_242 = arith.constant 0 : index
    %c112_243 = arith.constant 112 : index
    %251 = vector.load %arg7[%c1_241, %c0_242, %c112_243] : memref<2x8x256xf32, #tpu.memory_space<vmem>>, vector<1x8x16xf32>
    %252 = vector.shape_cast %251 : vector<1x8x16xf32> to vector<8x16xf32>
    %253 = vector.shape_cast %250 : vector<8x16xf32> to vector<1x8x16xf32>
    tpu.vector_store %arg7[%c1_241, %c0_242, %c112_243], %253 {strides = array<i32>} : memref<2x8x256xf32, #tpu.memory_space<vmem>>, vector<1x8x16xf32>,
    %c1_244 = arith.constant 1 : index
    %c0_245 = arith.constant 0 : index
    %c144_246 = arith.constant 144 : index
    %254 = vector.load %arg9[%c1_244, %c0_245, %c144_246] : memref<2x8x288xf32, #tpu.memory_space<vmem>>, vector<1x8x16xf32>
    %255 = vector.shape_cast %254 : vector<1x8x16xf32> to vector<8x16xf32>
    %c1_247 = arith.constant 1 : index
    %c0_248 = arith.constant 0 : index
    %c128_249 = arith.constant 128 : index
    %256 = vector.load %arg7[%c1_247, %c0_248, %c128_249] : memref<2x8x256xf32, #tpu.memory_space<vmem>>, vector<1x8x16xf32>
    %257 = vector.shape_cast %256 : vector<1x8x16xf32> to vector<8x16xf32>
    %258 = vector.shape_cast %255 : vector<8x16xf32> to vector<1x8x16xf32>
    tpu.vector_store %arg7[%c1_247, %c0_248, %c128_249], %258 {strides = array<i32>} : memref<2x8x256xf32, #tpu.memory_space<vmem>>, vector<1x8x16xf32>,
    %c1_250 = arith.constant 1 : index
    %c0_251 = arith.constant 0 : index
    %c162_252 = arith.constant 162 : index
    %259 = vector.load %arg9[%c1_250, %c0_251, %c162_252] : memref<2x8x288xf32, #tpu.memory_space<vmem>>, vector<1x8x16xf32>
    %260 = vector.shape_cast %259 : vector<1x8x16xf32> to vector<8x16xf32>
    %c1_253 = arith.constant 1 : index
    %c0_254 = arith.constant 0 : index
    %c144_255 = arith.constant 144 : index
    %261 = vector.load %arg7[%c1_253, %c0_254, %c144_255] : memref<2x8x256xf32, #tpu.memory_space<vmem>>, vector<1x8x16xf32>
    %262 = vector.shape_cast %261 : vector<1x8x16xf32> to vector<8x16xf32>
    %263 = vector.shape_cast %260 : vector<8x16xf32> to vector<1x8x16xf32>
    tpu.vector_store %arg7[%c1_253, %c0_254, %c144_255], %263 {strides = array<i32>} : memref<2x8x256xf32, #tpu.memory_space<vmem>>, vector<1x8x16xf32>,
    %c1_256 = arith.constant 1 : index
    %c0_257 = arith.constant 0 : index
    %c180_258 = arith.constant 180 : index
    %264 = vector.load %arg9[%c1_256, %c0_257, %c180_258] : memref<2x8x288xf32, #tpu.memory_space<vmem>>, vector<1x8x16xf32>
    %265 = vector.shape_cast %264 : vector<1x8x16xf32> to vector<8x16xf32>
    %c1_259 = arith.constant 1 : index
    %c0_260 = arith.constant 0 : index
    %c160_261 = arith.constant 160 : index
    %266 = vector.load %arg7[%c1_259, %c0_260, %c160_261] : memref<2x8x256xf32, #tpu.memory_space<vmem>>, vector<1x8x16xf32>
    %267 = vector.shape_cast %266 : vector<1x8x16xf32> to vector<8x16xf32>
    %268 = vector.shape_cast %265 : vector<8x16xf32> to vector<1x8x16xf32>
    tpu.vector_store %arg7[%c1_259, %c0_260, %c160_261], %268 {strides = array<i32>} : memref<2x8x256xf32, #tpu.memory_space<vmem>>, vector<1x8x16xf32>,
    %c1_262 = arith.constant 1 : index
    %c0_263 = arith.constant 0 : index
    %c198_264 = arith.constant 198 : index
    %269 = vector.load %arg9[%c1_262, %c0_263, %c198_264] : memref<2x8x288xf32, #tpu.memory_space<vmem>>, vector<1x8x16xf32>
    %270 = vector.shape_cast %269 : vector<1x8x16xf32> to vector<8x16xf32>
    %c1_265 = arith.constant 1 : index
    %c0_266 = arith.constant 0 : index
    %c176_267 = arith.constant 176 : index
    %271 = vector.load %arg7[%c1_265, %c0_266, %c176_267] : memref<2x8x256xf32, #tpu.memory_space<vmem>>, vector<1x8x16xf32>
    %272 = vector.shape_cast %271 : vector<1x8x16xf32> to vector<8x16xf32>
    %273 = vector.shape_cast %270 : vector<8x16xf32> to vector<1x8x16xf32>
    tpu.vector_store %arg7[%c1_265, %c0_266, %c176_267], %273 {strides = array<i32>} : memref<2x8x256xf32, #tpu.memory_space<vmem>>, vector<1x8x16xf32>,
    %c1_268 = arith.constant 1 : index
    %c0_269 = arith.constant 0 : index
    %c216_270 = arith.constant 216 : index
    %274 = vector.load %arg9[%c1_268, %c0_269, %c216_270] : memref<2x8x288xf32, #tpu.memory_space<vmem>>, vector<1x8x16xf32>
    %275 = vector.shape_cast %274 : vector<1x8x16xf32> to vector<8x16xf32>
    %c1_271 = arith.constant 1 : index
    %c0_272 = arith.constant 0 : index
    %c192_273 = arith.constant 192 : index
    %276 = vector.load %arg7[%c1_271, %c0_272, %c192_273] : memref<2x8x256xf32, #tpu.memory_space<vmem>>, vector<1x8x16xf32>
    %277 = vector.shape_cast %276 : vector<1x8x16xf32> to vector<8x16xf32>
    %278 = vector.shape_cast %275 : vector<8x16xf32> to vector<1x8x16xf32>
    tpu.vector_store %arg7[%c1_271, %c0_272, %c192_273], %278 {strides = array<i32>} : memref<2x8x256xf32, #tpu.memory_space<vmem>>, vector<1x8x16xf32>,
    %c1_274 = arith.constant 1 : index
    %c0_275 = arith.constant 0 : index
    %c234_276 = arith.constant 234 : index
    %279 = vector.load %arg9[%c1_274, %c0_275, %c234_276] : memref<2x8x288xf32, #tpu.memory_space<vmem>>, vector<1x8x16xf32>
    %280 = vector.shape_cast %279 : vector<1x8x16xf32> to vector<8x16xf32>
    %c1_277 = arith.constant 1 : index
    %c0_278 = arith.constant 0 : index
    %c208_279 = arith.constant 208 : index
    %281 = vector.load %arg7[%c1_277, %c0_278, %c208_279] : memref<2x8x256xf32, #tpu.memory_space<vmem>>, vector<1x8x16xf32>
    %282 = vector.shape_cast %281 : vector<1x8x16xf32> to vector<8x16xf32>
    %283 = vector.shape_cast %280 : vector<8x16xf32> to vector<1x8x16xf32>
    tpu.vector_store %arg7[%c1_277, %c0_278, %c208_279], %283 {strides = array<i32>} : memref<2x8x256xf32, #tpu.memory_space<vmem>>, vector<1x8x16xf32>,
    %c1_280 = arith.constant 1 : index
    %c0_281 = arith.constant 0 : index
    %c252_282 = arith.constant 252 : index
    %284 = vector.load %arg9[%c1_280, %c0_281, %c252_282] : memref<2x8x288xf32, #tpu.memory_space<vmem>>, vector<1x8x16xf32>
    %285 = vector.shape_cast %284 : vector<1x8x16xf32> to vector<8x16xf32>
    %c1_283 = arith.constant 1 : index
    %c0_284 = arith.constant 0 : index
    %c224_285 = arith.constant 224 : index
    %286 = vector.load %arg7[%c1_283, %c0_284, %c224_285] : memref<2x8x256xf32, #tpu.memory_space<vmem>>, vector<1x8x16xf32>
    %287 = vector.shape_cast %286 : vector<1x8x16xf32> to vector<8x16xf32>
    %288 = vector.shape_cast %285 : vector<8x16xf32> to vector<1x8x16xf32>
    tpu.vector_store %arg7[%c1_283, %c0_284, %c224_285], %288 {strides = array<i32>} : memref<2x8x256xf32, #tpu.memory_space<vmem>>, vector<1x8x16xf32>,
    %c1_286 = arith.constant 1 : index
    %c0_287 = arith.constant 0 : index
    %c270_288 = arith.constant 270 : index
    %289 = vector.load %arg9[%c1_286, %c0_287, %c270_288] : memref<2x8x288xf32, #tpu.memory_space<vmem>>, vector<1x8x16xf32>
    %290 = vector.shape_cast %289 : vector<1x8x16xf32> to vector<8x16xf32>
    %c1_289 = arith.constant 1 : index
    %c0_290 = arith.constant 0 : index
    %c240_291 = arith.constant 240 : index
    %291 = vector.load %arg7[%c1_289, %c0_290, %c240_291] : memref<2x8x256xf32, #tpu.memory_space<vmem>>, vector<1x8x16xf32>
    %292 = vector.shape_cast %291 : vector<1x8x16xf32> to vector<8x16xf32>
    %293 = vector.shape_cast %290 : vector<8x16xf32> to vector<1x8x16xf32>
    tpu.vector_store %arg7[%c1_289, %c0_290, %c240_291], %293 {strides = array<i32>} : memref<2x8x256xf32, #tpu.memory_space<vmem>>, vector<1x8x16xf32>,
    return
  }
  func.func @transform_0(%arg0: i32) -> (i32, i32, i32) {
    %c0_i32 = arith.constant 0 : i32
    %c0_i32_0 = arith.constant 0 : i32
    %c0_i32_1 = arith.constant 0 : i32
    %c0_i32_2 = arith.constant 0 : i32
    return %c0_i32, %c0_i32_0, %c0_i32_1 : i32, i32, i32
  }
  func.func @transform_1(%arg0: i32) -> (i32, i32) {
    %c0_i32 = arith.constant 0 : i32
    %c0_i32_0 = arith.constant 0 : i32
    %c0_i32_1 = arith.constant 0 : i32
    return %c0_i32, %c0_i32_0 : i32, i32
  }
  func.func @transform_2(%arg0: i32) -> (i32, i32) {
    %c0_i32 = arith.constant 0 : i32
    %c0_i32_0 = arith.constant 0 : i32
    %c0_i32_1 = arith.constant 0 : i32
    return %c0_i32, %c0_i32_0 : i32, i32
  }
  func.func @transform_3(%arg0: i32) -> (i32, i32) {
    %c0_i32 = arith.constant 0 : i32
    %c0_i32_0 = arith.constant 0 : i32
    %c0_i32_1 = arith.constant 0 : i32
    return %c0_i32, %c0_i32_0 : i32, i32
  }
  func.func @transform_4(%arg0: i32) -> (i32, i32) {
    %c0_i32 = arith.constant 0 : i32
    %c0_i32_0 = arith.constant 0 : i32
    %c0_i32_1 = arith.constant 0 : i32
    return %c0_i32, %c0_i32_0 : i32, i32
  }
  func.func @transform_5(%arg0: i32) -> (i32, i32) {
    %c0_i32 = arith.constant 0 : i32
    %c0_i32_0 = arith.constant 0 : i32
    %c0_i32_1 = arith.constant 0 : i32
    return %c0_i32, %c0_i32_0 : i32, i32
  }
  func.func @transform_6(%arg0: i32) -> (i32, i32, i32) {
    %c0_i32 = arith.constant 0 : i32
    %c0_i32_0 = arith.constant 0 : i32
    %c0_i32_1 = arith.constant 0 : i32
    %c0_i32_2 = arith.constant 0 : i32
    return %c0_i32, %c0_i32_0, %c0_i32_1 : i32, i32, i32
  }
}

</mosaic_0001>

<llo_original>
// kernel: tpu_custom_call.1
$region0: #{tpu_custom_call.1}
  #allocation0 [shape = 'u32[]', space=smem, size = 0x4, offset = 0x4, fixed_abs, tag = 'smem constant byte address 0x4 - core index']
  #allocation1 [shape = 'u32[144,128]{1,0:T(1,128)}', space=vmem, size = 0x12000, scoped, tag = 'internal scratch']
  #allocation2 [shape = 'f32[36,288]{1,0:T(8,128)}', space=vmem, size = 0xf000, scoped, tag = 'scratch operand']
  #allocation3 [shape = 'f32[2,8,288]{2,1,0:T(8,128)}', space=vmem, size = 0x6000, scoped, tag = 'scratch operand']
  %s0 = inlined_call_operand.vmem [shape: f32[2,4,342], index: 0, kind: input, shape index: {}]
  %s1 = inlined_call_operand.vmem [shape: bf16[8,36], index: 1, kind: input, shape index: {}]
  %s2 = inlined_call_operand.vmem [shape: f32[8,1], index: 2, kind: input, shape index: {}]
  %s3 = inlined_call_operand.vmem [shape: f32[1,288], index: 3, kind: input, shape index: {}]
  %s4 = inlined_call_operand.vmem [shape: f32[8,1], index: 4, kind: input, shape index: {}]
  %s5 = inlined_call_operand.vmem [shape: f32[8,1], index: 5, kind: input, shape index: {}]
  %s6 = inlined_call_operand.hbm [shape: f32[2,8,256], index: 6, kind: output, shape index: {}]
  %s7 = sld [smem:[#allocation0]]
  $region34: #{tpu_custom_call.1} parent=0
    _
  %s9 = ssub.s32 1, %s7
  %s10 = scalar_select 0, %s9, %s7
  $region1: #{tpu_custom_call.1} parent=0
    #allocation4 [shape = 'u8[16384]{0}', space=vmem, size = 0x4000, scoped, tag = 'output window, operand 0, single buffered']
    #allocation5 [shape = 's32[1]{0}', space=sflag, size = 0x4, scoped, tag = 'scoped memory for tpu_custom_call.1']
    %11 = vsyncpa [#allocation5], 0
    // Predicated region
    $region2: #{tpu_custom_call.1} parent=1 // pred_check
      _
    $region3: #{tpu_custom_call.1} parent=1 // pred_check_branch
      %13 = sbr.rel (0) target = $region5
    $region4: #{tpu_custom_call.1} parent=1 // pred_region
      _
    $region5: #{tpu_custom_call.1} parent=1 // pred_fallthru
      _
    // Predicated region
    $region6: #{tpu_custom_call.1} parent=1 // pred_check
      _
    $region7: #{tpu_custom_call.1} parent=1 // pred_check_branch
      %15 = sbr.rel (0) target = $region9
    $region8: #{tpu_custom_call.1} parent=1 // pred_region
      _
    $region9: #{tpu_custom_call.1} parent=1 // pred_fallthru
      _
    // Predicated region
    $region10: #{tpu_custom_call.1} parent=1 // pred_check
      _
    $region11: #{tpu_custom_call.1} parent=1 // pred_check_branch
      %17 = sbr.rel (0) target = $region13
    $region12: #{tpu_custom_call.1} parent=1 // pred_region
      _
    $region13: #{tpu_custom_call.1} parent=1 // pred_fallthru
      _
    // Predicated region
    $region14: #{tpu_custom_call.1} parent=1 // pred_check
      _
    $region15: #{tpu_custom_call.1} parent=1 // pred_check_branch
      %19 = sbr.rel (0) target = $region17
    $region16: #{tpu_custom_call.1} parent=1 // pred_region
      _
    $region17: #{tpu_custom_call.1} parent=1 // pred_fallthru
      _
    // Predicated region
    $region18: #{tpu_custom_call.1} parent=1 // pred_check
      _
    $region19: #{tpu_custom_call.1} parent=1 // pred_check_branch
      %21 = sbr.rel (0) target = $region21
    $region20: #{tpu_custom_call.1} parent=1 // pred_region
      _
    $region21: #{tpu_custom_call.1} parent=1 // pred_fallthru
      _
    // Predicated region
    $region22: #{tpu_custom_call.1} parent=1 // pred_check
      _
    $region23: #{tpu_custom_call.1} parent=1 // pred_check_branch
      %23 = sbr.rel (0) target = $region25
    $region24: #{tpu_custom_call.1} parent=1 // pred_region
      _
    $region25: #{tpu_custom_call.1} parent=1 // pred_fallthru
      _
    %v25 = vld [vmem:[%s0] sm:$0xff]
    %v26 = vld [vmem:[%s0 + $0x8] sm:$0xf]
    %v28 = vcombine.high %v25, %v25
    %30 = vst [vmem:[#allocation2] sm:$0xf] %v25
    %31 = vst [vmem:[#allocation2 + $0x8] sm:$0xf] %v28
    %vm32 = vcmask 257024
    %33 = vst.msk [vmem:[#allocation2 + $0x10] sm:$0xf] %vm32, %v26
    %v34 = vld [vmem:[%s0] sm:$0xff]
    %v35 = vld [vmem:[%s0 + $0x8] sm:$0xf]
    %v38 = vcombine.low %v34, %v34
    %v39 = vcombine.low %v35, %v35
    %40 = vrot.lane.b32.xlu0 %v38, 127
    %v41 = vpop.permute.xlu0 %40
    %42 = vrot.lane.b32.xlu0 %v34, 127
    %v43 = vpop.permute.xlu0 %42
    %44 = vrot.lane.b32.xlu0 %v39, 127
    %v45 = vpop.permute.xlu0 %44
    %vm46 = vcmask 1039360
    %v47 = vsel %vm46, %v41, %v43
    %v48 = vsel %vm46, %v43, %v45
    %52 = vst [vmem:[#allocation2] sm:$0xf0] %v47
    %53 = vst [vmem:[#allocation2 + $0x8] sm:$0xf0] %v48
    %vm54 = vcmask 261124
    %55 = vst.msk [vmem:[#allocation2 + $0x10] sm:$0xf0] %vm54, %v45
    %v56 = vld [vmem:[%s0] sm:$0xff]
    %v57 = vld [vmem:[%s0 + $0x8] sm:$0xf]
    %v60 = vcombine.high %v56, %v56
    %61 = vrot.lane.b32.xlu0 %v56, 126
    %v62 = vpop.permute.xlu0 %61
    %63 = vrot.lane.b32.xlu0 %v60, 126
    %v64 = vpop.permute.xlu0 %63
    %65 = vrot.lane.b32.xlu0 %v57, 126
    %v66 = vpop.permute.xlu0 %65
    %vm67 = vcmask 1031168
    %v68 = vsel %vm67, %v62, %v64
    %v69 = vsel %vm67, %v64, %v66
    %73 = vst [vmem:[#allocation2 + $0x18] sm:$0xf] %v68
    %74 = vst [vmem:[#allocation2 + $0x20] sm:$0xf] %v69
    %75 = vst.msk [vmem:[#allocation2 + $0x28] sm:$0xf] %vm32, %v66
    %v76 = vld [vmem:[%s0] sm:$0xff]
    %v77 = vld [vmem:[%s0 + $0x8] sm:$0xf]
    %v80 = vcombine.low %v76, %v76
    %v81 = vcombine.low %v77, %v77
    %82 = vrot.lane.b32.xlu0 %v80, 110
    %v83 = vpop.permute.xlu0 %82
    %84 = vrot.lane.b32.xlu0 %v76, 110
    %v85 = vpop.permute.xlu0 %84
    %86 = vrot.lane.b32.xlu0 %v81, 110
    %v87 = vpop.permute.xlu0 %86
    %vm88 = vcmask 900096
    %v89 = vsel %vm88, %v83, %v85
    %v90 = vsel %vm88, %v85, %v87
    %94 = vst [vmem:[#allocation2 + $0x18] sm:$0xf0] %v89
    %95 = vst [vmem:[#allocation2 + $0x20] sm:$0xf0] %v90
    %96 = vst.msk [vmem:[#allocation2 + $0x28] sm:$0xf0] %vm54, %v87
    %v97 = vld [vmem:[%s0] sm:$0xff]
    %v98 = vld [vmem:[%s0 + $0x8] sm:$0xf]
    %v101 = vcombine.high %v97, %v97
    %102 = vrot.lane.b32.xlu0 %v97, 109
    %v103 = vpop.permute.xlu0 %102
    %104 = vrot.lane.b32.xlu0 %v101, 109
    %v105 = vpop.permute.xlu0 %104
    %106 = vrot.lane.b32.xlu0 %v98, 109
    %v107 = vpop.permute.xlu0 %106
    %vm108 = vcmask 891904
    %v109 = vsel %vm108, %v103, %v105
    %v110 = vsel %vm108, %v105, %v107
    %114 = vst [vmem:[#allocation2 + $0x30] sm:$0xf] %v109
    %115 = vst [vmem:[#allocation2 + $0x38] sm:$0xf] %v110
    %116 = vst.msk [vmem:[#allocation2 + $0x40] sm:$0xf] %vm32, %v107
    %v117 = vld [vmem:[%s0] sm:$0xff]
    %v118 = vld [vmem:[%s0 + $0x8] sm:$0xf]
    %v121 = vcombine.low %v117, %v117
    %v122 = vcombine.low %v118, %v118
    %123 = vrot.lane.b32.xlu0 %v121, 108
    %v124 = vpop.permute.xlu0 %123
    %125 = vrot.lane.b32.xlu0 %v117, 108
    %v126 = vpop.permute.xlu0 %125
    %127 = vrot.lane.b32.xlu0 %v122, 108
    %v128 = vpop.permute.xlu0 %127
    %vm129 = vcmask 883712
    %v130 = vsel %vm129, %v124, %v126
    %v131 = vsel %vm129, %v126, %v128
    %135 = vst [vmem:[#allocation2 + $0x30] sm:$0xf0] %v130
    %136 = vst [vmem:[#allocation2 + $0x38] sm:$0xf0] %v131
    %137 = vst.msk [vmem:[#allocation2 + $0x40] sm:$0xf0] %vm54, %v128
    %v138 = vld [vmem:[%s0] sm:$0xff]
    %v139 = vld [vmem:[%s0 + $0x8] sm:$0xf]
    %v142 = vcombine.high %v138, %v138
    %143 = vrot.lane.b32.xlu0 %v138, 92
    %v144 = vpop.permute.xlu0 %143
    %145 = vrot.lane.b32.xlu0 %v142, 92
    %v146 = vpop.permute.xlu0 %145
    %147 = vrot.lane.b32.xlu0 %v139, 92
    %v148 = vpop.permute.xlu0 %147
    %vm149 = vcmask 752640
    %v150 = vsel %vm149, %v144, %v146
    %v151 = vsel %vm149, %v146, %v148
    %155 = vst [vmem:[#allocation2 + $0x48] sm:$0xf] %v150
    %156 = vst [vmem:[#allocation2 + $0x50] sm:$0xf] %v151
    %157 = vst.msk [vmem:[#allocation2 + $0x58] sm:$0xf] %vm32, %v148
    %v158 = vld [vmem:[%s0] sm:$0xff]
    %v159 = vld [vmem:[%s0 + $0x8] sm:$0xf]
    %v162 = vcombine.low %v158, %v158
    %v163 = vcombine.low %v159, %v159
    %164 = vrot.lane.b32.xlu0 %v162, 91
    %v165 = vpop.permute.xlu0 %164
    %166 = vrot.lane.b32.xlu0 %v158, 91
    %v167 = vpop.permute.xlu0 %166
    %168 = vrot.lane.b32.xlu0 %v163, 91
    %v169 = vpop.permute.xlu0 %168
    %vm170 = vcmask 744448
    %v171 = vsel %vm170, %v165, %v167
    %v172 = vsel %vm170, %v167, %v169
    %176 = vst [vmem:[#allocation2 + $0x48] sm:$0xf0] %v171
    %177 = vst [vmem:[#allocation2 + $0x50] sm:$0xf0] %v172
    %178 = vst.msk [vmem:[#allocation2 + $0x58] sm:$0xf0] %vm54, %v169
    %v179 = vld [vmem:[%s0] sm:$0xff]
    %v180 = vld [vmem:[%s0 + $0x8] sm:$0xf]
    %v183 = vcombine.high %v179, %v179
    %184 = vrot.lane.b32.xlu0 %v179, 90
    %v185 = vpop.permute.xlu0 %184
    %186 = vrot.lane.b32.xlu0 %v183, 90
    %v187 = vpop.permute.xlu0 %186
    %188 = vrot.lane.b32.xlu0 %v180, 90
    %v189 = vpop.permute.xlu0 %188
    %vm190 = vcmask 736256
    %v191 = vsel %vm190, %v185, %v187
    %v192 = vsel %vm190, %v187, %v189
    %196 = vst [vmem:[#allocation2 + $0x60] sm:$0xf] %v191
    %197 = vst [vmem:[#allocation2 + $0x68] sm:$0xf] %v192
    %198 = vst.msk [vmem:[#allocation2 + $0x70] sm:$0xf] %vm32, %v189
    %v199 = vld [vmem:[%s1] sm:$0xf]
    %v200 = vld [vmem:[#allocation2] sm:$0xff]
    %v201 = vld [vmem:[#allocation2 + $0x8] sm:$0xff]
    %v202 = vld [vmem:[#allocation2 + $0x10] sm:$0xff]
    %v203 = vld [vmem:[#allocation2 + $0x18] sm:$0xff]
    %v204 = vld [vmem:[#allocation2 + $0x20] sm:$0xff]
    %v205 = vld [vmem:[#allocation2 + $0x28] sm:$0xff]
    %v206 = vld [vmem:[#allocation2 + $0x30] sm:$0xff]
    %v207 = vld [vmem:[#allocation2 + $0x38] sm:$0xff]
    %v208 = vld [vmem:[#allocation2 + $0x40] sm:$0xff]
    %v209 = vld [vmem:[#allocation2 + $0x48] sm:$0xff]
    %v210 = vld [vmem:[#allocation2 + $0x50] sm:$0xff]
    %v211 = vld [vmem:[#allocation2 + $0x58] sm:$0xff]
    %v212 = vld [vmem:[#allocation2 + $0x60] sm:$0xf]
    %v213 = vld [vmem:[#allocation2 + $0x68] sm:$0xf]
    %v214 = vld [vmem:[#allocation2 + $0x70] sm:$0xf]
    %v215 = vpack.c.bf16 %v203, %v200
    %v216 = vpack.c.bf16 %v204, %v201
    %v217 = vpack.c.bf16 %v205, %v202
    %v218 = vpack.c.bf16 %v209, %v206
    %v219 = vpack.c.bf16 %v210, %v207
    %v220 = vpack.c.bf16 %v211, %v208
    %v221 = vpack.c.bf16 %v212, %v212
    %v222 = vpack.c.bf16 %v213, %v213
    %v223 = vpack.c.bf16 %v214, %v214
    %v224 = vld [vmem:[%s2] sm:$0xff]
    %226 = vset.pattern.permute.xlu0 0
    %227 = vperm.xlu0 %226, %v224
    %v228 = vpop.permute.xlu0 %227
    %vm230 = vcmask 293888
    %v232 = vsel %vm230, %v199, 0
    %vm234 = vcmask 1041408
    %v236 = vsel %vm234, %v221, 0
    %v239 = vsel %vm234, %v222, 0
    %v242 = vsel %vm234, %v223, 0
    %244 = vmatprep.subr.bf16.mxu0 0
    %245 = vmatpush1.bf16.msra.mxu0 0
    %246 = vmatprep.subr.bf16.mxu0 0
    %247 = vmatpush1.bf16.msra.mxu0 0
    %248 = vmatprep.subr.bf16.mxu0 0
    %249 = vmatpush1.bf16.msra.mxu0 0
    %250 = vmatprep.subr.bf16.mxu0 0
    %251 = vmatpush1.bf16.msra.mxu0 0
    %252 = vmatprep.subr.bf16.mxu0 0
    %253 = vmatpush1.bf16.msra.mxu0 0
    %254 = vmatprep.subr.bf16.mxu0 %v239
    %255 = vmatpush1.bf16.msra.mxu0 %v236
    %256 = vmatprep.subr.bf16.mxu0 %v219
    %257 = vmatpush1.bf16.msra.mxu0 %v218
    %258 = vmatprep.subr.bf16.mxu0 %v216
    %259 = vmatpush1.bf16.msra.mxu0 %v215
    %260 = vmatprep.subr.bf16.mxu0 0
    %261 = vmatpush2.bf16.msra.mxu0 0
    %262 = vmatprep.subr.bf16.mxu0 0
    %263 = vmatpush2.bf16.msra.mxu0 0
    %264 = vmatprep.subr.bf16.mxu0 0
    %265 = vmatpush2.bf16.msra.mxu0 0
    %266 = vmatprep.subr.bf16.mxu0 0
    %267 = vmatpush2.bf16.msra.mxu0 0
    %268 = vmatprep.subr.bf16.mxu0 0
    %269 = vmatpush2.bf16.msra.mxu0 0
    %270 = vmatprep.subr.bf16.mxu0 0
    %271 = vmatpush2.bf16.msra.mxu0 0
    %272 = vmatprep.subr.bf16.mxu0 0
    %273 = vmatpush2.bf16.msra.mxu0 0
    %274 = vmatprep.subr.bf16.mxu0 0
    %275 = vmatpush2.bf16.msra.mxu0 0
    %276 = vmatprep.mubr.bf16.mxu0 0
    %277 = vmatmul.mubr.bf16.gmra.mxu0 %v232
    %v278 = vpop.f32.mrf.mxu0
    %v279 = vadd.f32 %v228, %v278
    %v280 = vpop.f32.mrf.mxu0
    %v281 = vadd.f32 %v228, %v280
    %v282 = vpop.f32.mrf.mxu0
    %v283 = vpop.f32.mrf.mxu0
    %284 = vdwg.mxu0
    %285 = vmatprep.subr.bf16.mxu0 0
    %286 = vmatpush1.bf16.msra.mxu0 0
    %287 = vmatprep.subr.bf16.mxu0 0
    %288 = vmatpush1.bf16.msra.mxu0 0
    %289 = vmatprep.subr.bf16.mxu0 0
    %290 = vmatpush1.bf16.msra.mxu0 0
    %291 = vmatprep.subr.bf16.mxu0 0
    %292 = vmatpush1.bf16.msra.mxu0 0
    %293 = vmatprep.subr.bf16.mxu0 0
    %294 = vmatpush1.bf16.msra.mxu0 0
    %295 = vmatprep.subr.bf16.mxu0 0
    %296 = vmatpush1.bf16.msra.mxu0 %v242
    %297 = vmatprep.subr.bf16.mxu0 0
    %298 = vmatpush1.bf16.msra.mxu0 %v220
    %299 = vmatprep.subr.bf16.mxu0 0
    %300 = vmatpush1.bf16.msra.mxu0 %v217
    %301 = vmatprep.subr.bf16.mxu0 0
    %302 = vmatpush2.bf16.msra.mxu0 0
    %303 = vmatprep.subr.bf16.mxu0 0
    %304 = vmatpush2.bf16.msra.mxu0 0
    %305 = vmatprep.subr.bf16.mxu0 0
    %306 = vmatpush2.bf16.msra.mxu0 0
    %307 = vmatprep.subr.bf16.mxu0 0
    %308 = vmatpush2.bf16.msra.mxu0 0
    %309 = vmatprep.subr.bf16.mxu0 0
    %310 = vmatpush2.bf16.msra.mxu0 0
    %311 = vmatprep.subr.bf16.mxu0 0
    %312 = vmatpush2.bf16.msra.mxu0 0
    %313 = vmatprep.subr.bf16.mxu0 0
    %314 = vmatpush2.bf16.msra.mxu0 0
    %315 = vmatprep.subr.bf16.mxu0 0
    %316 = vmatpush2.bf16.msra.mxu0 0
    %317 = vmatprep.mubr.bf16.mxu0 0
    %318 = vmatmul.mubr.bf16.gmra.mxu0 %v232
    %v319 = vpop.f32.mrf.mxu0
    %v320 = vadd.f32 %v228, %v319
    %v321 = vpop.f32.mrf.mxu0
    %v322 = vpop.f32.mrf.mxu0
    %v323 = vpop.f32.mrf.mxu0
    %324 = vdwg.mxu0
    %v325 = vmax.f32 %v279, 0.0
    %v326 = vmax.f32 %v281, 0.0
    %v327 = vmax.f32 %v320, 0.0
    %v328 = vld [vmem:[%s3] sm:$0x7]
    %v330 = vlaneseq
    %v331 = vshrl.u32 %v330, 7
    %v332 = vsub.s32 0, %v331
    %v333 = vrot.slane %v328, %v332
    %v334 = vlaneseq
    %v335 = vshrl.u32 %v334, 7
    %v336 = vsub.s32 1, %v335
    %v337 = vrot.slane %v328, %v336
    %v338 = vlaneseq
    %v339 = vshrl.u32 %v338, 7
    %v340 = vsub.s32 2, %v339
    %v341 = vrot.slane %v328, %v340
    %v345 = vmul.f32 %v325, %v333
    %v346 = vmul.f32 %v326, %v337
    %v347 = vmul.f32 %v327, %v341
    %348 = vst [vmem:[#allocation3] sm:$0xff] %v345
    %349 = vst [vmem:[#allocation3 + $0x8] sm:$0xff] %v346
    %vm350 = vcmask 261120
    %351 = vst.msk [vmem:[#allocation3 + $0x10] sm:$0xff] %vm350, %v347
    %v352 = vadd.f32 %v345, %v346
    %v353 = vsel %vm350, %v347, 0.0
    %v354 = vadd.f32 %v352, %v353
    %355 = vadd.xlane.f32.xlu0 %v354
    %v356 = vpop.xlane.xlu0 %355
    %v357 = vadd.f32 %v356, 0.0
    %v358 = vmul.f32 %v345, %v345
    %v359 = vmul.f32 %v346, %v346
    %v360 = vmul.f32 %v347, %v347
    %v361 = vadd.f32 %v358, %v359
    %v362 = vsel %vm350, %v360, 0.0
    %v363 = vadd.f32 %v361, %v362
    %364 = vadd.xlane.f32.xlu0 %v363
    %v365 = vpop.xlane.xlu0 %364
    %v366 = vadd.f32 %v365, 0.0
    %s367 = scalar_lea.vmem %s0, 12
    %v368 = vld [vmem:[%s367] sm:$0xff]
    %v369 = vld [vmem:[%s367 + $0x8] sm:$0xf]
    %v371 = vcombine.high %v368, %v368
    %373 = vst [vmem:[#allocation2] sm:$0xf] %v368
    %374 = vst [vmem:[#allocation2 + $0x8] sm:$0xf] %v371
    %375 = vst.msk [vmem:[#allocation2 + $0x10] sm:$0xf] %vm32, %v369
    %v376 = vld [vmem:[%s367] sm:$0xff]
    %v377 = vld [vmem:[%s367 + $0x8] sm:$0xf]
    %v380 = vcombine.low %v376, %v376
    %v381 = vcombine.low %v377, %v377
    %382 = vrot.lane.b32.xlu0 %v380, 127
    %v383 = vpop.permute.xlu0 %382
    %384 = vrot.lane.b32.xlu0 %v376, 127
    %v385 = vpop.permute.xlu0 %384
    %386 = vrot.lane.b32.xlu0 %v381, 127
    %v387 = vpop.permute.xlu0 %386
    %v388 = vsel %vm46, %v383, %v385
    %v389 = vsel %vm46, %v385, %v387
    %393 = vst [vmem:[#allocation2] sm:$0xf0] %v388
    %394 = vst [vmem:[#allocation2 + $0x8] sm:$0xf0] %v389
    %395 = vst.msk [vmem:[#allocation2 + $0x10] sm:$0xf0] %vm54, %v387
    %v396 = vld [vmem:[%s367] sm:$0xff]
    %v397 = vld [vmem:[%s367 + $0x8] sm:$0xf]
    %v400 = vcombine.high %v396, %v396
    %401 = vrot.lane.b32.xlu0 %v396, 126
    %v402 = vpop.permute.xlu0 %401
    %403 = vrot.lane.b32.xlu0 %v400, 126
    %v404 = vpop.permute.xlu0 %403
    %405 = vrot.lane.b32.xlu0 %v397, 126
    %v406 = vpop.permute.xlu0 %405
    %v407 = vsel %vm67, %v402, %v404
    %v408 = vsel %vm67, %v404, %v406
    %412 = vst [vmem:[#allocation2 + $0x18] sm:$0xf] %v407
    %413 = vst [vmem:[#allocation2 + $0x20] sm:$0xf] %v408
    %414 = vst.msk [vmem:[#allocation2 + $0x28] sm:$0xf] %vm32, %v406
    %v415 = vld [vmem:[%s367] sm:$0xff]
    %v416 = vld [vmem:[%s367 + $0x8] sm:$0xf]
    %v419 = vcombine.low %v415, %v415
    %v420 = vcombine.low %v416, %v416
    %421 = vrot.lane.b32.xlu0 %v419, 110
    %v422 = vpop.permute.xlu0 %421
    %423 = vrot.lane.b32.xlu0 %v415, 110
    %v424 = vpop.permute.xlu0 %423
    %425 = vrot.lane.b32.xlu0 %v420, 110
    %v426 = vpop.permute.xlu0 %425
    %v427 = vsel %vm88, %v422, %v424
    %v428 = vsel %vm88, %v424, %v426
    %432 = vst [vmem:[#allocation2 + $0x18] sm:$0xf0] %v427
    %433 = vst [vmem:[#allocation2 + $0x20] sm:$0xf0] %v428
    %434 = vst.msk [vmem:[#allocation2 + $0x28] sm:$0xf0] %vm54, %v426
    %v435 = vld [vmem:[%s367] sm:$0xff]
    %v436 = vld [vmem:[%s367 + $0x8] sm:$0xf]
    %v439 = vcombine.high %v435, %v435
    %440 = vrot.lane.b32.xlu0 %v435, 109
    %v441 = vpop.permute.xlu0 %440
    %442 = vrot.lane.b32.xlu0 %v439, 109
    %v443 = vpop.permute.xlu0 %442
    %444 = vrot.lane.b32.xlu0 %v436, 109
    %v445 = vpop.permute.xlu0 %444
    %v446 = vsel %vm108, %v441, %v443
    %v447 = vsel %vm108, %v443, %v445
    %451 = vst [vmem:[#allocation2 + $0x30] sm:$0xf] %v446
    %452 = vst [vmem:[#allocation2 + $0x38] sm:$0xf] %v447
    %453 = vst.msk [vmem:[#allocation2 + $0x40] sm:$0xf] %vm32, %v445
    %v454 = vld [vmem:[%s367] sm:$0xff]
    %v455 = vld [vmem:[%s367 + $0x8] sm:$0xf]
    %v458 = vcombine.low %v454, %v454
    %v459 = vcombine.low %v455, %v455
    %460 = vrot.lane.b32.xlu0 %v458, 108
    %v461 = vpop.permute.xlu0 %460
    %462 = vrot.lane.b32.xlu0 %v454, 108
    %v463 = vpop.permute.xlu0 %462
    %464 = vrot.lane.b32.xlu0 %v459, 108
    %v465 = vpop.permute.xlu0 %464
    %v466 = vsel %vm129, %v461, %v463
    %v467 = vsel %vm129, %v463, %v465
    %471 = vst [vmem:[#allocation2 + $0x30] sm:$0xf0] %v466
    %472 = vst [vmem:[#allocation2 + $0x38] sm:$0xf0] %v467
    %473 = vst.msk [vmem:[#allocation2 + $0x40] sm:$0xf0] %vm54, %v465
    %v474 = vld [vmem:[%s367] sm:$0xff]
    %v475 = vld [vmem:[%s367 + $0x8] sm:$0xf]
    %v478 = vcombine.high %v474, %v474
    %479 = vrot.lane.b32.xlu0 %v474, 92
    %v480 = vpop.permute.xlu0 %479
    %481 = vrot.lane.b32.xlu0 %v478, 92
    %v482 = vpop.permute.xlu0 %481
    %483 = vrot.lane.b32.xlu0 %v475, 92
    %v484 = vpop.permute.xlu0 %483
    %v485 = vsel %vm149, %v480, %v482
    %v486 = vsel %vm149, %v482, %v484
    %490 = vst [vmem:[#allocation2 + $0x48] sm:$0xf] %v485
    %491 = vst [vmem:[#allocation2 + $0x50] sm:$0xf] %v486
    %492 = vst.msk [vmem:[#allocation2 + $0x58] sm:$0xf] %vm32, %v484
    %v493 = vld [vmem:[%s367] sm:$0xff]
    %v494 = vld [vmem:[%s367 + $0x8] sm:$0xf]
    %v497 = vcombine.low %v493, %v493
    %v498 = vcombine.low %v494, %v494
    %499 = vrot.lane.b32.xlu0 %v497, 91
    %v500 = vpop.permute.xlu0 %499
    %501 = vrot.lane.b32.xlu0 %v493, 91
    %v502 = vpop.permute.xlu0 %501
    %503 = vrot.lane.b32.xlu0 %v498, 91
    %v504 = vpop.permute.xlu0 %503
    %v505 = vsel %vm170, %v500, %v502
    %v506 = vsel %vm170, %v502, %v504
    %510 = vst [vmem:[#allocation2 + $0x48] sm:$0xf0] %v505
    %511 = vst [vmem:[#allocation2 + $0x50] sm:$0xf0] %v506
    %512 = vst.msk [vmem:[#allocation2 + $0x58] sm:$0xf0] %vm54, %v504
    %v513 = vld [vmem:[%s367] sm:$0xff]
    %v514 = vld [vmem:[%s367 + $0x8] sm:$0xf]
    %v517 = vcombine.high %v513, %v513
    %518 = vrot.lane.b32.xlu0 %v513, 90
    %v519 = vpop.permute.xlu0 %518
    %520 = vrot.lane.b32.xlu0 %v517, 90
    %v521 = vpop.permute.xlu0 %520
    %522 = vrot.lane.b32.xlu0 %v514, 90
    %v523 = vpop.permute.xlu0 %522
    %v524 = vsel %vm190, %v519, %v521
    %v525 = vsel %vm190, %v521, %v523
    %529 = vst [vmem:[#allocation2 + $0x60] sm:$0xf] %v524
    %530 = vst [vmem:[#allocation2 + $0x68] sm:$0xf] %v525
    %531 = vst.msk [vmem:[#allocation2 + $0x70] sm:$0xf] %vm32, %v523
    %v532 = vld [vmem:[%s1] sm:$0xf]
    %v533 = vld [vmem:[#allocation2] sm:$0xff]
    %v534 = vld [vmem:[#allocation2 + $0x8] sm:$0xff]
    %v535 = vld [vmem:[#allocation2 + $0x10] sm:$0xff]
    %v536 = vld [vmem:[#allocation2 + $0x18] sm:$0xff]
    %v537 = vld [vmem:[#allocation2 + $0x20] sm:$0xff]
    %v538 = vld [vmem:[#allocation2 + $0x28] sm:$0xff]
    %v539 = vld [vmem:[#allocation2 + $0x30] sm:$0xff]
    %v540 = vld [vmem:[#allocation2 + $0x38] sm:$0xff]
    %v541 = vld [vmem:[#allocation2 + $0x40] sm:$0xff]
    %v542 = vld [vmem:[#allocation2 + $0x48] sm:$0xff]
    %v543 = vld [vmem:[#allocation2 + $0x50] sm:$0xff]
    %v544 = vld [vmem:[#allocation2 + $0x58] sm:$0xff]
    %v545 = vld [vmem:[#allocation2 + $0x60] sm:$0xf]
    %v546 = vld [vmem:[#allocation2 + $0x68] sm:$0xf]
    %v547 = vld [vmem:[#allocation2 + $0x70] sm:$0xf]
    %v548 = vpack.c.bf16 %v536, %v533
    %v549 = vpack.c.bf16 %v537, %v534
    %v550 = vpack.c.bf16 %v538, %v535
    %v551 = vpack.c.bf16 %v542, %v539
    %v552 = vpack.c.bf16 %v543, %v540
    %v553 = vpack.c.bf16 %v544, %v541
    %v554 = vpack.c.bf16 %v545, %v545
    %v555 = vpack.c.bf16 %v546, %v546
    %v556 = vpack.c.bf16 %v547, %v547
    %v557 = vld [vmem:[%s2] sm:$0xff]
    %559 = vset.pattern.permute.xlu0 0
    %560 = vperm.xlu0 %559, %v557
    %v561 = vpop.permute.xlu0 %560
    %v564 = vsel %vm230, %v532, 0
    %v567 = vsel %vm234, %v554, 0
    %v570 = vsel %vm234, %v555, 0
    %v573 = vsel %vm234, %v556, 0
    %575 = vmatprep.subr.bf16.mxu0 0
    %576 = vmatpush1.bf16.msra.mxu0 0
    %577 = vmatprep.subr.bf16.mxu0 0
    %578 = vmatpush1.bf16.msra.mxu0 0
    %579 = vmatprep.subr.bf16.mxu0 0
    %580 = vmatpush1.bf16.msra.mxu0 0
    %581 = vmatprep.subr.bf16.mxu0 0
    %582 = vmatpush1.bf16.msra.mxu0 0
    %583 = vmatprep.subr.bf16.mxu0 0
    %584 = vmatpush1.bf16.msra.mxu0 0
    %585 = vmatprep.subr.bf16.mxu0 %v570
    %586 = vmatpush1.bf16.msra.mxu0 %v567
    %587 = vmatprep.subr.bf16.mxu0 %v552
    %588 = vmatpush1.bf16.msra.mxu0 %v551
    %589 = vmatprep.subr.bf16.mxu0 %v549
    %590 = vmatpush1.bf16.msra.mxu0 %v548
    %591 = vmatprep.subr.bf16.mxu0 0
    %592 = vmatpush2.bf16.msra.mxu0 0
    %593 = vmatprep.subr.bf16.mxu0 0
    %594 = vmatpush2.bf16.msra.mxu0 0
    %595 = vmatprep.subr.bf16.mxu0 0
    %596 = vmatpush2.bf16.msra.mxu0 0
    %597 = vmatprep.subr.bf16.mxu0 0
    %598 = vmatpush2.bf16.msra.mxu0 0
    %599 = vmatprep.subr.bf16.mxu0 0
    %600 = vmatpush2.bf16.msra.mxu0 0
    %601 = vmatprep.subr.bf16.mxu0 0
    %602 = vmatpush2.bf16.msra.mxu0 0
    %603 = vmatprep.subr.bf16.mxu0 0
    %604 = vmatpush2.bf16.msra.mxu0 0
    %605 = vmatprep.subr.bf16.mxu0 0
    %606 = vmatpush2.bf16.msra.mxu0 0
    %607 = vmatprep.mubr.bf16.mxu0 0
    %608 = vmatmul.mubr.bf16.gmra.mxu0 %v564
    %v609 = vpop.f32.mrf.mxu0
    %v610 = vadd.f32 %v561, %v609
    %v611 = vpop.f32.mrf.mxu0
    %v612 = vadd.f32 %v561, %v611
    %v613 = vpop.f32.mrf.mxu0
    %v614 = vpop.f32.mrf.mxu0
    %615 = vdwg.mxu0
    %616 = vmatprep.subr.bf16.mxu0 0
    %617 = vmatpush1.bf16.msra.mxu0 0
    %618 = vmatprep.subr.bf16.mxu0 0
    %619 = vmatpush1.bf16.msra.mxu0 0
    %620 = vmatprep.subr.bf16.mxu0 0
    %621 = vmatpush1.bf16.msra.mxu0 0
    %622 = vmatprep.subr.bf16.mxu0 0
    %623 = vmatpush1.bf16.msra.mxu0 0
    %624 = vmatprep.subr.bf16.mxu0 0
    %625 = vmatpush1.bf16.msra.mxu0 0
    %626 = vmatprep.subr.bf16.mxu0 0
    %627 = vmatpush1.bf16.msra.mxu0 %v573
    %628 = vmatprep.subr.bf16.mxu0 0
    %629 = vmatpush1.bf16.msra.mxu0 %v553
    %630 = vmatprep.subr.bf16.mxu0 0
    %631 = vmatpush1.bf16.msra.mxu0 %v550
    %632 = vmatprep.subr.bf16.mxu0 0
    %633 = vmatpush2.bf16.msra.mxu0 0
    %634 = vmatprep.subr.bf16.mxu0 0
    %635 = vmatpush2.bf16.msra.mxu0 0
    %636 = vmatprep.subr.bf16.mxu0 0
    %637 = vmatpush2.bf16.msra.mxu0 0
    %638 = vmatprep.subr.bf16.mxu0 0
    %639 = vmatpush2.bf16.msra.mxu0 0
    %640 = vmatprep.subr.bf16.mxu0 0
    %641 = vmatpush2.bf16.msra.mxu0 0
    %642 = vmatprep.subr.bf16.mxu0 0
    %643 = vmatpush2.bf16.msra.mxu0 0
    %644 = vmatprep.subr.bf16.mxu0 0
    %645 = vmatpush2.bf16.msra.mxu0 0
    %646 = vmatprep.subr.bf16.mxu0 0
    %647 = vmatpush2.bf16.msra.mxu0 0
    %648 = vmatprep.mubr.bf16.mxu0 0
    %649 = vmatmul.mubr.bf16.gmra.mxu0 %v564
    %v650 = vpop.f32.mrf.mxu0
    %v651 = vadd.f32 %v561, %v650
    %v652 = vpop.f32.mrf.mxu0
    %v653 = vpop.f32.mrf.mxu0
    %v654 = vpop.f32.mrf.mxu0
    %655 = vdwg.mxu0
    %v656 = vmax.f32 %v610, 0.0
    %v657 = vmax.f32 %v612, 0.0
    %v658 = vmax.f32 %v651, 0.0
    %v659 = vld [vmem:[%s3] sm:$0x7]
    %v661 = vlaneseq
    %v662 = vshrl.u32 %v661, 7
    %v663 = vsub.s32 0, %v662
    %v664 = vrot.slane %v659, %v663
    %v665 = vlaneseq
    %v666 = vshrl.u32 %v665, 7
    %v667 = vsub.s32 1, %v666
    %v668 = vrot.slane %v659, %v667
    %v669 = vlaneseq
    %v670 = vshrl.u32 %v669, 7
    %v671 = vsub.s32 2, %v670
    %v672 = vrot.slane %v659, %v671
    %v676 = vmul.f32 %v656, %v664
    %v677 = vmul.f32 %v657, %v668
    %v678 = vmul.f32 %v658, %v672
    %s679 = scalar_lea.vmem [#allocation3], 24
    %680 = vst [vmem:[%s679] sm:$0xff] %v676
    %681 = vst [vmem:[%s679 + $0x8] sm:$0xff] %v677
    %682 = vst.msk [vmem:[%s679 + $0x10] sm:$0xff] %vm350, %v678
    %v683 = vadd.f32 %v676, %v677
    %v684 = vsel %vm350, %v678, 0.0
    %v685 = vadd.f32 %v683, %v684
    %686 = vadd.xlane.f32.xlu0 %v685
    %v687 = vpop.xlane.xlu0 %686
    %v688 = vadd.f32 %v357, %v687
    %v689 = vmul.f32 %v676, %v676
    %v690 = vmul.f32 %v677, %v677
    %v691 = vmul.f32 %v678, %v678
    %v692 = vadd.f32 %v689, %v690
    %v693 = vsel %vm350, %v691, 0.0
    %v694 = vadd.f32 %v692, %v693
    %695 = vadd.xlane.f32.xlu0 %v694
    %v696 = vpop.xlane.xlu0 %695
    %v697 = vadd.f32 %v366, %v696
    %v698 = vmul.f32 %v688, 0.001953125
    %v699 = vmul.f32 %v697, 0.001953125
    %v700 = vmul.f32 %v698, %v698
    %v701 = vsub.f32 %v699, %v700
    %v702 = vmax.f32 %v701, 0.0
    %v703 = vadd.f32 %v702, 1e-05
    %v704 = vrsqrt.pop %v703
    %v705 = vld [vmem:[%s4] sm:$0xff]
    %v706 = vmul.f32 %v705, %v704
    %v707 = vld [vmem:[%s5] sm:$0xff]
    %v708 = vmul.f32 %v698, %v706
    %v709 = vsub.f32 %v707, %v708
    %v710 = vld [vmem:[#allocation3] sm:$0xff]
    %v711 = vld [vmem:[#allocation3 + $0x8] sm:$0xff]
    %v712 = vld [vmem:[#allocation3 + $0x10] sm:$0xff]
    %714 = vset.pattern.permute.xlu0 0
    %715 = vperm.xlu0 %714, %v706
    %v716 = vpop.permute.xlu0 %715
    %v718 = vmul.f32 %v710, %v716
    %v719 = vmul.f32 %v711, %v716
    %v720 = vmul.f32 %v712, %v716
    %722 = vset.pattern.permute.xlu0 0
    %723 = vperm.xlu0 %722, %v709
    %v724 = vpop.permute.xlu0 %723
    %v726 = vadd.f32 %v718, %v724
    %v727 = vadd.f32 %v719, %v724
    %v728 = vadd.f32 %v720, %v724
    %729 = vst [vmem:[#allocation3] sm:$0xff] %v726
    %730 = vst [vmem:[#allocation3 + $0x8] sm:$0xff] %v727
    %731 = vst.msk [vmem:[#allocation3 + $0x10] sm:$0xff] %vm350, %v728
    %v732 = vld [vmem:[#allocation3] sm:$0xff]
    %vm733 = vcmask 130048
    %734 = vst.msk [vmem:[#allocation4] sm:$0xff] %vm733, %v732
    %v735 = vld [vmem:[#allocation3] sm:$0xff]
    %737 = vrot.lane.b32.xlu0 %v735, 126
    %v738 = vpop.permute.xlu0 %737
    %vm740 = vcmask 261248
    %741 = vst.msk [vmem:[#allocation4] sm:$0xff] %vm740, %v738
    %v742 = vld [vmem:[#allocation3] sm:$0xff]
    %744 = vrot.lane.b32.xlu0 %v742, 124
    %v745 = vpop.permute.xlu0 %744
    %vm747 = vcmask 392448
    %748 = vst.msk [vmem:[#allocation4] sm:$0xff] %vm747, %v745
    %v749 = vld [vmem:[#allocation3] sm:$0xff]
    %751 = vrot.lane.b32.xlu0 %v749, 122
    %v752 = vpop.permute.xlu0 %751
    %vm754 = vcmask 523648
    %755 = vst.msk [vmem:[#allocation4] sm:$0xff] %vm754, %v752
    %v756 = vld [vmem:[#allocation3] sm:$0xff]
    %758 = vrot.lane.b32.xlu0 %v756, 120
    %v759 = vpop.permute.xlu0 %758
    %vm761 = vcmask 654848
    %762 = vst.msk [vmem:[#allocation4] sm:$0xff] %vm761, %v759
    %v763 = vld [vmem:[#allocation3] sm:$0xff]
    %765 = vrot.lane.b32.xlu0 %v763, 118
    %v766 = vpop.permute.xlu0 %765
    %vm768 = vcmask 786048
    %769 = vst.msk [vmem:[#allocation4] sm:$0xff] %vm768, %v766
    %v770 = vld [vmem:[#allocation3] sm:$0xff]
    %772 = vrot.lane.b32.xlu0 %v770, 116
    %v773 = vpop.permute.xlu0 %772
    %vm775 = vcmask 917248
    %776 = vst.msk [vmem:[#allocation4] sm:$0xff] %vm775, %v773
    %v777 = vld [vmem:[#allocation3] sm:$0xff]
    %v778 = vld [vmem:[#allocation3 + $0x8] sm:$0xff]
    %781 = vrot.lane.b32.xlu0 %v777, 114
    %v782 = vpop.permute.xlu0 %781
    %783 = vrot.lane.b32.xlu0 %v778, 114
    %v784 = vpop.permute.xlu0 %783
    %vm785 = vcmask 932864
    %v786 = vsel %vm785, %v782, %v784
    %vm788 = vcmask 1048448
    %789 = vst.msk [vmem:[#allocation4] sm:$0xff] %vm788, %v786
    %v790 = vld [vmem:[#allocation3 + $0x8] sm:$0xff]
    %792 = vrot.lane.b32.xlu0 %v790, 112
    %v793 = vpop.permute.xlu0 %792
    %795 = vst.msk [vmem:[#allocation4 + $0x8] sm:$0xff] %vm733, %v793
    %v796 = vld [vmem:[#allocation3 + $0x8] sm:$0xff]
    %798 = vrot.lane.b32.xlu0 %v796, 110
    %v799 = vpop.permute.xlu0 %798
    %801 = vst.msk [vmem:[#allocation4 + $0x8] sm:$0xff] %vm740, %v799
    %v802 = vld [vmem:[#allocation3 + $0x8] sm:$0xff]
    %804 = vrot.lane.b32.xlu0 %v802, 108
    %v805 = vpop.permute.xlu0 %804
    %807 = vst.msk [vmem:[#allocation4 + $0x8] sm:$0xff] %vm747, %v805
    %v808 = vld [vmem:[#allocation3 + $0x8] sm:$0xff]
    %810 = vrot.lane.b32.xlu0 %v808, 106
    %v811 = vpop.permute.xlu0 %810
    %813 = vst.msk [vmem:[#allocation4 + $0x8] sm:$0xff] %vm754, %v811
    %v814 = vld [vmem:[#allocation3 + $0x8] sm:$0xff]
    %816 = vrot.lane.b32.xlu0 %v814, 104
    %v817 = vpop.permute.xlu0 %816
    %819 = vst.msk [vmem:[#allocation4 + $0x8] sm:$0xff] %vm761, %v817
    %v820 = vld [vmem:[#allocation3 + $0x8] sm:$0xff]
    %822 = vrot.lane.b32.xlu0 %v820, 102
    %v823 = vpop.permute.xlu0 %822
    %825 = vst.msk [vmem:[#allocation4 + $0x8] sm:$0xff] %vm768, %v823
    %v826 = vld [vmem:[#allocation3 + $0x8] sm:$0xff]
    %v827 = vld [vmem:[#allocation3 + $0x10] sm:$0xff]
    %830 = vrot.lane.b32.xlu0 %v826, 100
    %v831 = vpop.permute.xlu0 %830
    %832 = vrot.lane.b32.xlu0 %v827, 100
    %v833 = vpop.permute.xlu0 %832
    %vm834 = vcmask 818176
    %v835 = vsel %vm834, %v831, %v833
    %837 = vst.msk [vmem:[#allocation4 + $0x8] sm:$0xff] %vm775, %v835
    %v838 = vld [vmem:[#allocation3 + $0x10] sm:$0xff]
    %840 = vrot.lane.b32.xlu0 %v838, 98
    %v841 = vpop.permute.xlu0 %840
    %843 = vst.msk [vmem:[#allocation4 + $0x8] sm:$0xff] %vm788, %v841
    %v844 = vld [vmem:[%s679] sm:$0xff]
    %v845 = vld [vmem:[%s679 + $0x8] sm:$0xff]
    %v846 = vld [vmem:[%s679 + $0x10] sm:$0xff]
    %v847 = vmul.f32 %v844, %v716
    %v848 = vmul.f32 %v845, %v716
    %v849 = vmul.f32 %v846, %v716
    %v850 = vadd.f32 %v847, %v724
    %v851 = vadd.f32 %v848, %v724
    %v852 = vadd.f32 %v849, %v724
    %853 = vst [vmem:[%s679] sm:$0xff] %v850
    %854 = vst [vmem:[%s679 + $0x8] sm:$0xff] %v851
    %855 = vst.msk [vmem:[%s679 + $0x10] sm:$0xff] %vm350, %v852
    %v856 = vld [vmem:[%s679] sm:$0xff]
    %s857 = scalar_lea.vmem [#allocation4], 16
    %858 = vst.msk [vmem:[%s857] sm:$0xff] %vm733, %v856
    %v859 = vld [vmem:[%s679] sm:$0xff]
    %861 = vrot.lane.b32.xlu0 %v859, 126
    %v862 = vpop.permute.xlu0 %861
    %864 = vst.msk [vmem:[%s857] sm:$0xff] %vm740, %v862
    %v865 = vld [vmem:[%s679] sm:$0xff]
    %867 = vrot.lane.b32.xlu0 %v865, 124
    %v868 = vpop.permute.xlu0 %867
    %870 = vst.msk [vmem:[%s857] sm:$0xff] %vm747, %v868
    %v871 = vld [vmem:[%s679] sm:$0xff]
    %873 = vrot.lane.b32.xlu0 %v871, 122
    %v874 = vpop.permute.xlu0 %873
    %876 = vst.msk [vmem:[%s857] sm:$0xff] %vm754, %v874
    %v877 = vld [vmem:[%s679] sm:$0xff]
    %879 = vrot.lane.b32.xlu0 %v877, 120
    %v880 = vpop.permute.xlu0 %879
    %882 = vst.msk [vmem:[%s857] sm:$0xff] %vm761, %v880
    %v883 = vld [vmem:[%s679] sm:$0xff]
    %885 = vrot.lane.b32.xlu0 %v883, 118
    %v886 = vpop.permute.xlu0 %885
    %888 = vst.msk [vmem:[%s857] sm:$0xff] %vm768, %v886
    %v889 = vld [vmem:[%s679] sm:$0xff]
    %891 = vrot.lane.b32.xlu0 %v889, 116
    %v892 = vpop.permute.xlu0 %891
    %894 = vst.msk [vmem:[%s857] sm:$0xff] %vm775, %v892
    %v895 = vld [vmem:[%s679] sm:$0xff]
    %v896 = vld [vmem:[%s679 + $0x8] sm:$0xff]
    %899 = vrot.lane.b32.xlu0 %v895, 114
    %v900 = vpop.permute.xlu0 %899
    %901 = vrot.lane.b32.xlu0 %v896, 114
    %v902 = vpop.permute.xlu0 %901
    %v903 = vsel %vm785, %v900, %v902
    %905 = vst.msk [vmem:[%s857] sm:$0xff] %vm788, %v903
    %v906 = vld [vmem:[%s679 + $0x8] sm:$0xff]
    %908 = vrot.lane.b32.xlu0 %v906, 112
    %v909 = vpop.permute.xlu0 %908
    %911 = vst.msk [vmem:[%s857 + $0x8] sm:$0xff] %vm733, %v909
    %v912 = vld [vmem:[%s679 + $0x8] sm:$0xff]
    %914 = vrot.lane.b32.xlu0 %v912, 110
    %v915 = vpop.permute.xlu0 %914
    %917 = vst.msk [vmem:[%s857 + $0x8] sm:$0xff] %vm740, %v915
    %v918 = vld [vmem:[%s679 + $0x8] sm:$0xff]
    %920 = vrot.lane.b32.xlu0 %v918, 108
    %v921 = vpop.permute.xlu0 %920
    %923 = vst.msk [vmem:[%s857 + $0x8] sm:$0xff] %vm747, %v921
    %v924 = vld [vmem:[%s679 + $0x8] sm:$0xff]
    %926 = vrot.lane.b32.xlu0 %v924, 106
    %v927 = vpop.permute.xlu0 %926
    %929 = vst.msk [vmem:[%s857 + $0x8] sm:$0xff] %vm754, %v927
    %v930 = vld [vmem:[%s679 + $0x8] sm:$0xff]
    %932 = vrot.lane.b32.xlu0 %v930, 104
    %v933 = vpop.permute.xlu0 %932
    %935 = vst.msk [vmem:[%s857 + $0x8] sm:$0xff] %vm761, %v933
    %v936 = vld [vmem:[%s679 + $0x8] sm:$0xff]
    %938 = vrot.lane.b32.xlu0 %v936, 102
    %v939 = vpop.permute.xlu0 %938
    %941 = vst.msk [vmem:[%s857 + $0x8] sm:$0xff] %vm768, %v939
    %v942 = vld [vmem:[%s679 + $0x8] sm:$0xff]
    %v943 = vld [vmem:[%s679 + $0x10] sm:$0xff]
    %946 = vrot.lane.b32.xlu0 %v942, 100
    %v947 = vpop.permute.xlu0 %946
    %948 = vrot.lane.b32.xlu0 %v943, 100
    %v949 = vpop.permute.xlu0 %948
    %v950 = vsel %vm834, %v947, %v949
    %952 = vst.msk [vmem:[%s857 + $0x8] sm:$0xff] %vm775, %v950
    %v953 = vld [vmem:[%s679 + $0x10] sm:$0xff]
    %955 = vrot.lane.b32.xlu0 %v953, 98
    %v956 = vpop.permute.xlu0 %955
    %958 = vst.msk [vmem:[%s857 + $0x8] sm:$0xff] %vm788, %v956
    // Predicated region
    $region26: #{tpu_custom_call.1} parent=1 // pred_check
      _
    $region27: #{tpu_custom_call.1} parent=1 // pred_check_branch
      %960 = sbr.rel (0) target = $region29
    $region28: #{tpu_custom_call.1} parent=1 // pred_region
      %s962 = ssub.s32 512, 512
      %963 = vsyncadd [#allocation5], %s962
      %s964 = sshll.u32 [#allocation4], 4
      %s965 = int_to_ptr.vmem [resolvable:$true] %s964
      %970 = dma.vmem_to_hbm [thread:$0]  %s965, 512, %s6, [#allocation5], 256, 256, 16
    $region29: #{tpu_custom_call.1} parent=1 // pred_fallthru
      _
    // Predicated region
    $region30: #{tpu_custom_call.1} parent=1 // pred_check
      _
    $region31: #{tpu_custom_call.1} parent=1 // pred_check_branch
      %972 = sbr.rel (0) target = $region33
    $region32: #{tpu_custom_call.1} parent=1 // pred_region
      %973 = dma.done [#allocation5], 512
    $region33: #{tpu_custom_call.1} parent=1 // pred_fallthru
      _
    %974 = vsyncpa [#allocation5], 1

</llo_original>
